<compile_context>
chip_gen: v5e
topology: v5e:2x2
jax: 0.10.0
libtpu: 0.0.40
codegen_flags: <defaults>
</compile_context>

<pallas_src>
import jax
import jax.numpy as jnp
from jax.experimental import pallas as pl
from jax.experimental.pallas import tpu as pltpu

# Fixed hidden sizes from the module definition (H1 padded to a lane multiple).
H1, H2, H3 = 784, 512, 256
H1P = 896  # 7 * 128

MAX_TILE_B = 512          # rows per grid step for large batches
MIN_TWO_TILE_BATCH = 128  # below this, don't force a 2-step grid


def _round_up(n, m):
    return ((n + m - 1) // m) * m


def _choose_tiling(batch):
    """Pick (tile_b, num_tiles) minimising padding, with >=2 tiles for mid/large batches."""
    num_tiles = pl.cdiv(batch, MAX_TILE_B)
    if batch >= MIN_TWO_TILE_BATCH:
        num_tiles = max(num_tiles, 2)        # let v7x's 2nd TensorCore get work
    rows = pl.cdiv(batch, num_tiles)
    align = 16 if rows >= 16 else 8          # 16 so the in-kernel half-split stays sublane-aligned
    return _round_up(rows, align), num_tiles


def _make_kernel(tile_b, split):
    half = tile_b // 2

    def kernel(x_ref, w1_ref, b1_ref, w2_ref, b2_ref,
               w3_ref, b3_ref, w4_ref, b4_ref, out_ref):
        w1 = w1_ref[...]; b1 = b1_ref[...]
        w2 = w2_ref[...]; b2 = b2_ref[...]
        w3 = w3_ref[...]; b3 = b3_ref[...]
        w4 = w4_ref[...]; b4 = b4_ref[...]

        def forward(x):
            # Linear(in_dim, 896-padded) + Tanh   (Dropout(0.3) identity at eval)
            h = jnp.dot(x.astype(jnp.bfloat16), w1,
                        preferred_element_type=jnp.float32) + b1
            h = jnp.tanh(h)
            # Linear(896-padded, 512) + ReLU
            h = jnp.dot(h.astype(jnp.bfloat16), w2,
                        preferred_element_type=jnp.float32) + b2
            h = jnp.maximum(h, 0.0)
            # Linear(512, 256) + Tanh             (Dropout(0.5) identity at eval)
            h = jnp.dot(h.astype(jnp.bfloat16), w3,
                        preferred_element_type=jnp.float32) + b3
            h = jnp.tanh(h)
            # classifier: Linear(256, out_dim)
            logits = jnp.dot(h.astype(jnp.bfloat16), w4,
                             preferred_element_type=jnp.float32) + b4
            # argmax over last axis (first occurrence on ties, like torch.argmax).
            col = jax.lax.broadcasted_iota(jnp.int32, logits.shape, 1)
            mx = jnp.max(logits, axis=-1, keepdims=True)
            cand = jnp.where(logits == mx, col, jnp.iinfo(jnp.int32).max)
            return jnp.min(cand, axis=-1, keepdims=True).astype(jnp.int32)

        if split:
            # Two independent row chunks -> MXU of one chunk overlaps the
            # VPU/EUP epilogue (bias/tanh/relu) of the other.
            out_ref[:half, :] = forward(x_ref[:half, :])
            out_ref[half:, :] = forward(x_ref[half:, :])
        else:
            out_ref[...] = forward(x_ref[...])

    return kernel


def mlp_predict(x, packed):
    """Fused MLP + argmax Pallas kernel. x: (batch, in_dim) f32 (or bf16). Returns (batch,) int32."""
    w1, b1, w2, b2, w3, b3, w4, b4 = packed
    batch, in_dim = x.shape
    out_dim = w4.shape[1]

    tile_b, num_tiles = _choose_tiling(batch)
    padded_batch = tile_b * num_tiles
    if padded_batch != batch:
        x = jnp.pad(x, ((0, padded_batch - batch), (0, 0)))
    split = (tile_b >= 16) and (tile_b % 16 == 0)

    def resident(arr):
        # Same block index every step -> stays VMEM-resident (one DMA).
        return pl.BlockSpec(arr.shape, lambda i: (0, 0))

    in_specs = [
        pl.BlockSpec((tile_b, in_dim), lambda i: (i, 0)),   # x: tiled over batch
        resident(w1), resident(b1),
        resident(w2), resident(b2),
        resident(w3), resident(b3),
        resident(w4), resident(b4),
    ]
    out_specs = pl.BlockSpec((tile_b, 1), lambda i: (i, 0))

    flops = 2 * padded_batch * (in_dim * H1P + H1P * H2 + H2 * H3 + H3 * out_dim)
    weight_bytes = sum(int(a.size) * a.dtype.itemsize
                       for a in (w1, b1, w2, b2, w3, b3, w4, b4))
    bytes_accessed = (padded_batch * in_dim * x.dtype.itemsize   # x
                      + weight_bytes                             # weights + biases
                      + padded_batch * 4)                        # int32 predictions
    cost = pl.CostEstimate(flops=flops,
                           transcendentals=padded_batch * (H1P + H3),
                           bytes_accessed=bytes_accessed)

    out = pl.pallas_call(
        _make_kernel(tile_b, split),
        out_shape=jax.ShapeDtypeStruct((padded_batch, 1), jnp.int32),
        grid=(num_tiles,),
        in_specs=in_specs,
        out_specs=out_specs,
        compiler_params=pltpu.CompilerParams(
            dimension_semantics=("parallel",),
            # v5e's scoped-VMEM default is only 16 MiB; be explicit so 512-row
            # tiles with realistic in_dim never trip it (actual use ~10 MB).
            vmem_limit_bytes=48 * 1024 * 1024),
        cost_estimate=cost,
    )(x, w1, b1, w2, b2, w3, b3, w4, b4)
    # Padded rows are garbage by construction -- slice them off here.
    return out[:batch, 0]


def init_params(key, in_dim, out_dim):
    """PyTorch-style init U(-1/sqrt(fan_in), 1/sqrt(fan_in)), weights stored (fan_in, fan_out)."""
    dims = [(in_dim, H1), (H1, H2), (H2, H3), (H3, out_dim)]
    params = []
    for (fan_in, fan_out) in dims:
        key, kw, kb = jax.random.split(key, 3)
        bound = 1.0 / (fan_in ** 0.5)
        w = jax.random.uniform(kw, (fan_in, fan_out), jnp.float32, -bound, bound)
        b = jax.random.uniform(kb, (1, fan_out), jnp.float32, -bound, bound)
        params.append((w, b))
    return params


def pack_params(params):
    """Pad H1 (784 -> 896) with zeros and cast weights to bf16; biases stay f32."""
    (w1, b1), (w2, b2), (w3, b3), (w4, b4) = params
    w1p = jnp.pad(w1, ((0, 0), (0, H1P - H1)))          # (in_dim, 896)
    b1p = jnp.pad(b1, ((0, 0), (0, H1P - H1)))          # (1, 896); tanh(0)=0 rows hit zero rows of w2
    w2p = jnp.pad(w2, ((0, H1P - H1), (0, 0)))          # (896, 512), padded rows are 0
    return (w1p.astype(jnp.bfloat16), b1p,
            w2p.astype(jnp.bfloat16), b2,
            w3.astype(jnp.bfloat16), b3,
            w4.astype(jnp.bfloat16), b4)


def reference_logits(x, packed):
    """Pure-JAX reference of the same (bf16-operand, f32-accumulate) forward pass."""
    w1, b1, w2, b2, w3, b3, w4, b4 = packed

    def lin(h, w, b):
        return jnp.dot(h.astype(jnp.bfloat16), w,
                       preferred_element_type=jnp.float32) + b

    h = jnp.tanh(lin(x, w1, b1))
    h = jnp.maximum(lin(h, w2, b2), 0.0)
    h = jnp.tanh(lin(h, w3, b3))
    return lin(h, w4, b4)


def reference_predict(x, packed):
    return jnp.argmax(reference_logits(x, packed), axis=-1).astype(jnp.int32)


if __name__ == "__main__":
    key = jax.random.PRNGKey(0)
    key, kx_small, kx_big = jax.random.split(key, 3)

    in_dim, out_dim = 32, 10
    params = init_params(key, in_dim, out_dim)
    packed = pack_params(params)

    # Small batch exercises the single-tile/no-split path; the larger batch
    # exercises the 2-tile grid and the in-kernel two-chunk interleave.
    for batch, kx in ((8, kx_small), (160, kx_big)):
        x = jax.random.normal(kx, (batch, in_dim), jnp.float32)
        pred = mlp_predict(x, packed)
        jax.block_until_ready(pred)

        ref = reference_predict(x, packed)
        assert pred.shape == (batch,)
        assert pred.dtype == jnp.int32
        mismatch = pred != ref
        if bool(jnp.any(mismatch)):
            # Accept only flips caused by numerically tied logits (different
            # f32 accumulation order between the kernel and the XLA reference).
            lg = reference_logits(x, packed)
            best = jnp.max(lg, axis=-1)
            picked = jnp.take_along_axis(lg, pred[:, None], axis=-1)[:, 0]
            gap = jnp.where(mismatch, best - picked, 0.0)
            assert bool(jnp.all(gap <= 1e-3)), (batch, pred, ref)

    print("KERNEL_OK")
</pallas_src>

<mosaic_0001>
module attributes {stable_mosaic.version = 11 : i64} {
  func.func @kernel(%arg0: i32, %arg1: memref<8x32xf32, #tpu.memory_space<vmem>>, %arg2: memref<32x896xbf16, #tpu.memory_space<vmem>>, %arg3: memref<1x896xf32, #tpu.memory_space<vmem>>, %arg4: memref<896x512xbf16, #tpu.memory_space<vmem>>, %arg5: memref<1x512xf32, #tpu.memory_space<vmem>>, %arg6: memref<512x256xbf16, #tpu.memory_space<vmem>>, %arg7: memref<1x256xf32, #tpu.memory_space<vmem>>, %arg8: memref<256x10xbf16, #tpu.memory_space<vmem>>, %arg9: memref<1x10xf32, #tpu.memory_space<vmem>>, %arg10: memref<8x1xi32, #tpu.memory_space<vmem>>) attributes {dimension_semantics = [#tpu.dimension_semantics<parallel>], iteration_bounds = array<i64: 1>, scalar_prefetch = 0 : i64, scratch_operands = 0 : i64, tpu.core_type = #tpu.core_type<tc>, window_params = [{transform_indices = @transform_0, window_bounds = array<i64: 8, 32>}, {pipeline_mode = #tpu.pipeline_mode<synchronous>, transform_indices = @transform_1, window_bounds = array<i64: 32, 896>}, {pipeline_mode = #tpu.pipeline_mode<synchronous>, transform_indices = @transform_2, window_bounds = array<i64: 1, 896>}, {pipeline_mode = #tpu.pipeline_mode<synchronous>, transform_indices = @transform_3, window_bounds = array<i64: 896, 512>}, {pipeline_mode = #tpu.pipeline_mode<synchronous>, transform_indices = @transform_4, window_bounds = array<i64: 1, 512>}, {pipeline_mode = #tpu.pipeline_mode<synchronous>, transform_indices = @transform_5, window_bounds = array<i64: 512, 256>}, {pipeline_mode = #tpu.pipeline_mode<synchronous>, transform_indices = @transform_6, window_bounds = array<i64: 1, 256>}, {pipeline_mode = #tpu.pipeline_mode<synchronous>, transform_indices = @transform_7, window_bounds = array<i64: 256, 10>}, {pipeline_mode = #tpu.pipeline_mode<synchronous>, transform_indices = @transform_8, window_bounds = array<i64: 1, 10>}, {transform_indices = @transform_9, window_bounds = array<i64: 8, 1>}]} {
    %c0 = arith.constant 0 : index
    %c0_0 = arith.constant 0 : index
    %0 = vector.load %arg2[%c0, %c0_0] : memref<32x896xbf16, #tpu.memory_space<vmem>>, vector<32x896xbf16>
    %c0_1 = arith.constant 0 : index
    %c0_2 = arith.constant 0 : index
    %1 = vector.load %arg3[%c0_1, %c0_2] : memref<1x896xf32, #tpu.memory_space<vmem>>, vector<1x896xf32>
    %c0_3 = arith.constant 0 : index
    %c0_4 = arith.constant 0 : index
    %2 = vector.load %arg4[%c0_3, %c0_4] : memref<896x512xbf16, #tpu.memory_space<vmem>>, vector<896x512xbf16>
    %c0_5 = arith.constant 0 : index
    %c0_6 = arith.constant 0 : index
    %3 = vector.load %arg5[%c0_5, %c0_6] : memref<1x512xf32, #tpu.memory_space<vmem>>, vector<1x512xf32>
    %c0_7 = arith.constant 0 : index
    %c0_8 = arith.constant 0 : index
    %4 = vector.load %arg6[%c0_7, %c0_8] : memref<512x256xbf16, #tpu.memory_space<vmem>>, vector<512x256xbf16>
    %c0_9 = arith.constant 0 : index
    %c0_10 = arith.constant 0 : index
    %5 = vector.load %arg7[%c0_9, %c0_10] : memref<1x256xf32, #tpu.memory_space<vmem>>, vector<1x256xf32>
    %c0_11 = arith.constant 0 : index
    %c0_12 = arith.constant 0 : index
    %6 = vector.load %arg8[%c0_11, %c0_12] : memref<256x10xbf16, #tpu.memory_space<vmem>>, vector<256x10xbf16>
    %c0_13 = arith.constant 0 : index
    %c0_14 = arith.constant 0 : index
    %7 = vector.load %arg9[%c0_13, %c0_14] : memref<1x10xf32, #tpu.memory_space<vmem>>, vector<1x10xf32>
    %c0_15 = arith.constant 0 : index
    %c0_16 = arith.constant 0 : index
    %8 = vector.load %arg1[%c0_15, %c0_16] : memref<8x32xf32, #tpu.memory_space<vmem>>, vector<8x32xf32>
    %9 = arith.truncf %8 : vector<8x32xf32> to vector<8x32xbf16>
    %cst = arith.constant dense<0.000000e+00> : vector<8x896xf32>
    %10 = tpu.matmul %9, %0, %cst {dimension_numbers = #tpu.dot_dimension_numbers<[1], [0], [0], [1], [0, 0, 1, 1], [], []>} : vector<8x32xbf16>, vector<32x896xbf16>, vector<8x896xf32> -> vector<8x896xf32>
    %11 = vector.broadcast %1 : vector<1x896xf32> to vector<8x896xf32>
    %12 = arith.addf %10, %11 : vector<8x896xf32>
    %13 = math.tanh %12 : vector<8x896xf32>
    %14 = arith.truncf %13 : vector<8x896xf32> to vector<8x896xbf16>
    %cst_17 = arith.constant dense<0.000000e+00> : vector<8x512xf32>
    %15 = tpu.matmul %14, %2, %cst_17 {dimension_numbers = #tpu.dot_dimension_numbers<[1], [0], [0], [1], [0, 0, 1, 1], [], []>} : vector<8x896xbf16>, vector<896x512xbf16>, vector<8x512xf32> -> vector<8x512xf32>
    %16 = vector.broadcast %3 : vector<1x512xf32> to vector<8x512xf32>
    %17 = arith.addf %15, %16 : vector<8x512xf32>
    %cst_18 = arith.constant 0.000000e+00 : f32
    %18 = vector.broadcast %cst_18 : f32 to vector<8x512xf32>
    %19 = arith.maximumf %17, %18 : vector<8x512xf32>
    %20 = arith.truncf %19 : vector<8x512xf32> to vector<8x512xbf16>
    %cst_19 = arith.constant dense<0.000000e+00> : vector<8x256xf32>
    %21 = tpu.matmul %20, %4, %cst_19 {dimension_numbers = #tpu.dot_dimension_numbers<[1], [0], [0], [1], [0, 0, 1, 1], [], []>} : vector<8x512xbf16>, vector<512x256xbf16>, vector<8x256xf32> -> vector<8x256xf32>
    %22 = vector.broadcast %5 : vector<1x256xf32> to vector<8x256xf32>
    %23 = arith.addf %21, %22 : vector<8x256xf32>
    %24 = math.tanh %23 : vector<8x256xf32>
    %25 = arith.truncf %24 : vector<8x256xf32> to vector<8x256xbf16>
    %cst_20 = arith.constant dense<0.000000e+00> : vector<8x10xf32>
    %26 = tpu.matmul %25, %6, %cst_20 {dimension_numbers = #tpu.dot_dimension_numbers<[1], [0], [0], [1], [0, 0, 1, 1], [], []>} : vector<8x256xbf16>, vector<256x10xbf16>, vector<8x10xf32> -> vector<8x10xf32>
    %27 = vector.broadcast %7 : vector<1x10xf32> to vector<8x10xf32>
    %28 = arith.addf %26, %27 : vector<8x10xf32>
    %29 = tpu.iota {dimensions = array<i32: 1>} : vector<8x10xi32>
    %cst_21 = arith.constant dense<0xFF800000> : vector<8xf32>
    %30 = vector.multi_reduction <maximumf>, %28, %cst_21 [1] : vector<8x10xf32> to vector<8xf32>
    %31 = vector.shape_cast %30 : vector<8xf32> to vector<8x1xf32>
    %32 = vector.broadcast %31 : vector<8x1xf32> to vector<8x10xf32>
    %33 = arith.cmpf oeq, %28, %32 : vector<8x10xf32>
    %c2147483647_i32 = arith.constant 2147483647 : i32
    %34 = vector.broadcast %c2147483647_i32 : i32 to vector<8x10xi32>
    %35 = arith.select %33, %29, %34 : vector<8x10xi1>, vector<8x10xi32>
    %cst_22 = arith.constant dense<2147483647> : vector<8xi32>
    %36 = vector.multi_reduction <minsi>, %35, %cst_22 [1] : vector<8x10xi32> to vector<8xi32>
    %37 = vector.shape_cast %36 : vector<8xi32> to vector<8x1xi32>
    %c0_23 = arith.constant 0 : index
    %c0_24 = arith.constant 0 : index
    %38 = vector.load %arg10[%c0_23, %c0_24] : memref<8x1xi32, #tpu.memory_space<vmem>>, vector<8x1xi32>
    tpu.vector_store %arg10[%c0_23, %c0_24], %37 {strides = array<i32>} : memref<8x1xi32, #tpu.memory_space<vmem>>, vector<8x1xi32>,
    return
  }
  func.func @transform_0(%arg0: i32) -> (i32, i32) {
    %c0_i32 = arith.constant 0 : i32
    %c0_i32_0 = arith.constant 0 : i32
    return %arg0, %c0_i32 : i32, i32
  }
  func.func @transform_1(%arg0: i32) -> (i32, i32) {
    %c0_i32 = arith.constant 0 : i32
    %c0_i32_0 = arith.constant 0 : i32
    %c0_i32_1 = arith.constant 0 : i32
    return %c0_i32, %c0_i32_0 : i32, i32
  }
  func.func @transform_2(%arg0: i32) -> (i32, i32) {
    %c0_i32 = arith.constant 0 : i32
    %c0_i32_0 = arith.constant 0 : i32
    %c0_i32_1 = arith.constant 0 : i32
    return %c0_i32, %c0_i32_0 : i32, i32
  }
  func.func @transform_3(%arg0: i32) -> (i32, i32) {
    %c0_i32 = arith.constant 0 : i32
    %c0_i32_0 = arith.constant 0 : i32
    %c0_i32_1 = arith.constant 0 : i32
    return %c0_i32, %c0_i32_0 : i32, i32
  }
  func.func @transform_4(%arg0: i32) -> (i32, i32) {
    %c0_i32 = arith.constant 0 : i32
    %c0_i32_0 = arith.constant 0 : i32
    %c0_i32_1 = arith.constant 0 : i32
    return %c0_i32, %c0_i32_0 : i32, i32
  }
  func.func @transform_5(%arg0: i32) -> (i32, i32) {
    %c0_i32 = arith.constant 0 : i32
    %c0_i32_0 = arith.constant 0 : i32
    %c0_i32_1 = arith.constant 0 : i32
    return %c0_i32, %c0_i32_0 : i32, i32
  }
  func.func @transform_6(%arg0: i32) -> (i32, i32) {
    %c0_i32 = arith.constant 0 : i32
    %c0_i32_0 = arith.constant 0 : i32
    %c0_i32_1 = arith.constant 0 : i32
    return %c0_i32, %c0_i32_0 : i32, i32
  }
  func.func @transform_7(%arg0: i32) -> (i32, i32) {
    %c0_i32 = arith.constant 0 : i32
    %c0_i32_0 = arith.constant 0 : i32
    %c0_i32_1 = arith.constant 0 : i32
    return %c0_i32, %c0_i32_0 : i32, i32
  }
  func.func @transform_8(%arg0: i32) -> (i32, i32) {
    %c0_i32 = arith.constant 0 : i32
    %c0_i32_0 = arith.constant 0 : i32
    %c0_i32_1 = arith.constant 0 : i32
    return %c0_i32, %c0_i32_0 : i32, i32
  }
  func.func @transform_9(%arg0: i32) -> (i32, i32) {
    %c0_i32 = arith.constant 0 : i32
    %c0_i32_0 = arith.constant 0 : i32
    return %arg0, %c0_i32 : i32, i32
  }
}

</mosaic_0001>

<llo_original>
// kernel: tpu_custom_call.1
$region0: #{tpu_custom_call.1}
  #allocation0 [shape = 'u32[]', space=smem, size = 0x4, offset = 0x4, fixed_abs, tag = 'smem constant byte address 0x4 - core index']
  #allocation1 [shape = 'u32[72,128]{1,0:T(1,128)}', space=vmem, size = 0x9000, scoped, tag = 'internal scratch']
  %s0 = inlined_call_operand.vmem [shape: f32[8,32], index: 0, kind: input, shape index: {}]
  %s1 = inlined_call_operand.vmem [shape: bf16[32,896], index: 1, kind: input, shape index: {}]
  %s2 = inlined_call_operand.vmem [shape: f32[1,896], index: 2, kind: input, shape index: {}]
  %s3 = inlined_call_operand.hbm [shape: bf16[896,512], index: 3, kind: input, shape index: {}]
  %s4 = inlined_call_operand.vmem [shape: f32[1,512], index: 4, kind: input, shape index: {}]
  %s5 = inlined_call_operand.hbm [shape: bf16[512,256], index: 5, kind: input, shape index: {}]
  %s6 = inlined_call_operand.vmem [shape: f32[1,256], index: 6, kind: input, shape index: {}]
  %s7 = inlined_call_operand.vmem [shape: bf16[256,10], index: 7, kind: input, shape index: {}]
  %s8 = inlined_call_operand.vmem [shape: f32[1,10], index: 8, kind: input, shape index: {}]
  %s9 = inlined_call_operand.vmem [shape: s32[8,1], index: 9, kind: output, shape index: {}]
  %s10 = sld [smem:[#allocation0]]
  $region54: #{tpu_custom_call.1} parent=0
    _
  %s12 = ssub.s32 1, %s10
  %s13 = scalar_select 0, %s12, %s10
  $region1: #{tpu_custom_call.1} parent=0
    #allocation2 [shape = 'u8[917504]{0}', space=vmem, size = 0xe0000, scoped, tag = 'input window, operand 3, single buffered']
    #allocation3 [shape = 's32[1]{0}', space=sflag, size = 0x4, scoped, tag = 'scoped memory for tpu_custom_call.1']
    #allocation4 [shape = 'u8[262144]{0}', space=vmem, size = 0x40000, scoped, tag = 'input window, operand 5, single buffered']
    #allocation5 [shape = 's32[1]{0}', space=sflag, size = 0x4, scoped, tag = 'scoped memory for tpu_custom_call.1']
    %14 = vsyncpa [#allocation3], 0
    %15 = vsyncpa [#allocation5], 0
    // Predicated region
    $region2: #{tpu_custom_call.1} parent=1 // pred_check
      _
    $region3: #{tpu_custom_call.1} parent=1 // pred_check_branch
      %17 = sbr.rel (0) target = $region5
    $region4: #{tpu_custom_call.1} parent=1 // pred_region
      _
    $region5: #{tpu_custom_call.1} parent=1 // pred_fallthru
      _
    // Predicated region
    $region6: #{tpu_custom_call.1} parent=1 // pred_check
      _
    $region7: #{tpu_custom_call.1} parent=1 // pred_check_branch
      %19 = sbr.rel (0) target = $region9
    $region8: #{tpu_custom_call.1} parent=1 // pred_region
      _
    $region9: #{tpu_custom_call.1} parent=1 // pred_fallthru
      _
    // Predicated region
    $region10: #{tpu_custom_call.1} parent=1 // pred_check
      _
    $region11: #{tpu_custom_call.1} parent=1 // pred_check_branch
      %21 = sbr.rel (0) target = $region13
    $region12: #{tpu_custom_call.1} parent=1 // pred_region
      _
    $region13: #{tpu_custom_call.1} parent=1 // pred_fallthru
      _
    // Predicated region
    $region14: #{tpu_custom_call.1} parent=1 // pred_check
      _
    $region15: #{tpu_custom_call.1} parent=1 // pred_check_branch
      %23 = sbr.rel (0) target = $region17
    $region16: #{tpu_custom_call.1} parent=1 // pred_region
      %25 = vsyncadd [#allocation3], 0
      %s26 = sshll.u32 %s3, 4
      %s27 = int_to_ptr.hbm [resolvable:$true] %s26
      %s28 = sshll.u32 [#allocation2], 4
      %s29 = int_to_ptr.vmem [resolvable:$true] %s28
      %34 = dma.hbm_to_vmem [thread:$0]  %s27, 28672, %s29, [#allocation3], 256, 256, 16
    $region17: #{tpu_custom_call.1} parent=1 // pred_fallthru
      _
    // Predicated region
    $region18: #{tpu_custom_call.1} parent=1 // pred_check
      _
    $region19: #{tpu_custom_call.1} parent=1 // pred_check_branch
      %36 = sbr.rel (0) target = $region21
    $region20: #{tpu_custom_call.1} parent=1 // pred_region
      _
    $region21: #{tpu_custom_call.1} parent=1 // pred_fallthru
      _
    // Predicated region
    $region22: #{tpu_custom_call.1} parent=1 // pred_check
      _
    $region23: #{tpu_custom_call.1} parent=1 // pred_check_branch
      %38 = sbr.rel (0) target = $region25
    $region24: #{tpu_custom_call.1} parent=1 // pred_region
      %40 = vsyncadd [#allocation5], 0
      %s41 = sshll.u32 %s5, 4
      %s42 = int_to_ptr.hbm [resolvable:$true] %s41
      %s43 = sshll.u32 [#allocation4], 4
      %s44 = int_to_ptr.vmem [resolvable:$true] %s43
      %49 = dma.hbm_to_vmem [thread:$0]  %s42, 8192, %s44, [#allocation5], 128, 128, 8
    $region25: #{tpu_custom_call.1} parent=1 // pred_fallthru
      _
    // Predicated region
    $region26: #{tpu_custom_call.1} parent=1 // pred_check
      _
    $region27: #{tpu_custom_call.1} parent=1 // pred_check_branch
      %51 = sbr.rel (0) target = $region29
    $region28: #{tpu_custom_call.1} parent=1 // pred_region
      _
    $region29: #{tpu_custom_call.1} parent=1 // pred_fallthru
      _
    // Predicated region
    $region30: #{tpu_custom_call.1} parent=1 // pred_check
      _
    $region31: #{tpu_custom_call.1} parent=1 // pred_check_branch
      %53 = sbr.rel (0) target = $region33
    $region32: #{tpu_custom_call.1} parent=1 // pred_region
      _
    $region33: #{tpu_custom_call.1} parent=1 // pred_fallthru
      _
    // Predicated region
    $region34: #{tpu_custom_call.1} parent=1 // pred_check
      _
    $region35: #{tpu_custom_call.1} parent=1 // pred_check_branch
      %55 = sbr.rel (0) target = $region37
    $region36: #{tpu_custom_call.1} parent=1 // pred_region
      _
    $region37: #{tpu_custom_call.1} parent=1 // pred_fallthru
      _
    // Predicated region
    $region38: #{tpu_custom_call.1} parent=1 // pred_check
      _
    $region39: #{tpu_custom_call.1} parent=1 // pred_check_branch
      %57 = sbr.rel (0) target = $region41
    $region40: #{tpu_custom_call.1} parent=1 // pred_region
      %59 = dma.done [#allocation3], 28672
    $region41: #{tpu_custom_call.1} parent=1 // pred_fallthru
      _
    // Predicated region
    $region42: #{tpu_custom_call.1} parent=1 // pred_check
      _
    $region43: #{tpu_custom_call.1} parent=1 // pred_check_branch
      %61 = sbr.rel (0) target = $region45
    $region44: #{tpu_custom_call.1} parent=1 // pred_region
      %63 = dma.done [#allocation5], 8192
    $region45: #{tpu_custom_call.1} parent=1 // pred_fallthru
      _
    %v65 = vld [vmem:[%s1] sm:$0xff]
    %v66 = vld [vmem:[%s1 + $0x8] sm:$0xff]
    %v67 = vld [vmem:[%s1 + $0x10] sm:$0xff]
    %v68 = vld [vmem:[%s1 + $0x18] sm:$0xf]
    %v69 = vld [vmem:[%s1 + $0x1c] sm:$0xff]
    %v70 = vld [vmem:[%s1 + $0x24] sm:$0xff]
    %v71 = vld [vmem:[%s1 + $0x2c] sm:$0xff]
    %v72 = vld [vmem:[%s1 + $0x34] sm:$0xf]
    %v73 = vld [vmem:[%s1 + $0x38] sm:$0xff]
    %v74 = vld [vmem:[%s1 + $0x40] sm:$0xff]
    %v75 = vld [vmem:[%s1 + $0x48] sm:$0xff]
    %v76 = vld [vmem:[%s1 + $0x50] sm:$0xf]
    %v77 = vld [vmem:[%s1 + $0x54] sm:$0xff]
    %v78 = vld [vmem:[%s1 + $0x5c] sm:$0xff]
    %v79 = vld [vmem:[%s1 + $0x64] sm:$0xff]
    %v80 = vld [vmem:[%s1 + $0x6c] sm:$0xf]
    %v81 = vld [vmem:[%s2] sm:$0xff]
    %v82 = vld [vmem:[#allocation2] sm:$0xff]
    %v83 = vld [vmem:[#allocation2 + $0x8] sm:$0xff]
    %v84 = vld [vmem:[#allocation2 + $0x10] sm:$0xff]
    %v85 = vld [vmem:[#allocation2 + $0x18] sm:$0xff]
    %v86 = vld [vmem:[#allocation2 + $0x20] sm:$0xff]
    %v87 = vld [vmem:[#allocation2 + $0x28] sm:$0xff]
    %v88 = vld [vmem:[#allocation2 + $0x30] sm:$0xff]
    %v89 = vld [vmem:[#allocation2 + $0x38] sm:$0xff]
    %v90 = vld [vmem:[#allocation2 + $0x40] sm:$0xff]
    %v91 = vld [vmem:[#allocation2 + $0x48] sm:$0xff]
    %v92 = vld [vmem:[#allocation2 + $0x50] sm:$0xff]
    %v93 = vld [vmem:[#allocation2 + $0x58] sm:$0xff]
    %v94 = vld [vmem:[#allocation2 + $0x60] sm:$0xff]
    %v95 = vld [vmem:[#allocation2 + $0x68] sm:$0xff]
    %v96 = vld [vmem:[#allocation2 + $0x70] sm:$0xff]
    %v97 = vld [vmem:[#allocation2 + $0x78] sm:$0xff]
    %v98 = vld [vmem:[#allocation2 + $0x80] sm:$0xff]
    %v99 = vld [vmem:[#allocation2 + $0x88] sm:$0xff]
    %v100 = vld [vmem:[#allocation2 + $0x90] sm:$0xff]
    %v101 = vld [vmem:[#allocation2 + $0x98] sm:$0xff]
    %v102 = vld [vmem:[#allocation2 + $0xa0] sm:$0xff]
    %v103 = vld [vmem:[#allocation2 + $0xa8] sm:$0xff]
    %v104 = vld [vmem:[#allocation2 + $0xb0] sm:$0xff]
    %v105 = vld [vmem:[#allocation2 + $0xb8] sm:$0xff]
    %v106 = vld [vmem:[#allocation2 + $0xc0] sm:$0xff]
    %v107 = vld [vmem:[#allocation2 + $0xc8] sm:$0xff]
    %v108 = vld [vmem:[#allocation2 + $0xd0] sm:$0xff]
    %v109 = vld [vmem:[#allocation2 + $0xd8] sm:$0xff]
    %v110 = vld [vmem:[#allocation2 + $0xe0] sm:$0xff]
    %v111 = vld [vmem:[#allocation2 + $0xe8] sm:$0xff]
    %v112 = vld [vmem:[#allocation2 + $0xf0] sm:$0xff]
    %v113 = vld [vmem:[#allocation2 + $0xf8] sm:$0xff]
    %v114 = vld [vmem:[#allocation2 + $0x100] sm:$0xff]
    %v115 = vld [vmem:[#allocation2 + $0x108] sm:$0xff]
    %v116 = vld [vmem:[#allocation2 + $0x110] sm:$0xff]
    %v117 = vld [vmem:[#allocation2 + $0x118] sm:$0xff]
    %v118 = vld [vmem:[#allocation2 + $0x120] sm:$0xff]
    %v119 = vld [vmem:[#allocation2 + $0x128] sm:$0xff]
    %v120 = vld [vmem:[#allocation2 + $0x130] sm:$0xff]
    %v121 = vld [vmem:[#allocation2 + $0x138] sm:$0xff]
    %v122 = vld [vmem:[#allocation2 + $0x140] sm:$0xff]
    %v123 = vld [vmem:[#allocation2 + $0x148] sm:$0xff]
    %v124 = vld [vmem:[#allocation2 + $0x150] sm:$0xff]
    %v125 = vld [vmem:[#allocation2 + $0x158] sm:$0xff]
    %v126 = vld [vmem:[#allocation2 + $0x160] sm:$0xff]
    %v127 = vld [vmem:[#allocation2 + $0x168] sm:$0xff]
    %v128 = vld [vmem:[#allocation2 + $0x170] sm:$0xff]
    %v129 = vld [vmem:[#allocation2 + $0x178] sm:$0xff]
    %v130 = vld [vmem:[#allocation2 + $0x180] sm:$0xff]
    %v131 = vld [vmem:[#allocation2 + $0x188] sm:$0xff]
    %v132 = vld [vmem:[#allocation2 + $0x190] sm:$0xff]
    %v133 = vld [vmem:[#allocation2 + $0x198] sm:$0xff]
    %v134 = vld [vmem:[#allocation2 + $0x1a0] sm:$0xff]
    %v135 = vld [vmem:[#allocation2 + $0x1a8] sm:$0xff]
    %v136 = vld [vmem:[#allocation2 + $0x1b0] sm:$0xff]
    %v137 = vld [vmem:[#allocation2 + $0x1b8] sm:$0xff]
    %v138 = vld [vmem:[#allocation2 + $0x1c0] sm:$0xff]
    %v139 = vld [vmem:[#allocation2 + $0x1c8] sm:$0xff]
    %v140 = vld [vmem:[#allocation2 + $0x1d0] sm:$0xff]
    %v141 = vld [vmem:[#allocation2 + $0x1d8] sm:$0xff]
    %v142 = vld [vmem:[#allocation2 + $0x1e0] sm:$0xff]
    %v143 = vld [vmem:[#allocation2 + $0x1e8] sm:$0xff]
    %v144 = vld [vmem:[#allocation2 + $0x1f0] sm:$0xff]
    %v145 = vld [vmem:[#allocation2 + $0x1f8] sm:$0xff]
    %v146 = vld [vmem:[#allocation2 + $0x200] sm:$0xff]
    %v147 = vld [vmem:[#allocation2 + $0x208] sm:$0xff]
    %v148 = vld [vmem:[#allocation2 + $0x210] sm:$0xff]
    %v149 = vld [vmem:[#allocation2 + $0x218] sm:$0xff]
    %v150 = vld [vmem:[#allocation2 + $0x220] sm:$0xff]
    %v151 = vld [vmem:[#allocation2 + $0x228] sm:$0xff]
    %v152 = vld [vmem:[#allocation2 + $0x230] sm:$0xff]
    %v153 = vld [vmem:[#allocation2 + $0x238] sm:$0xff]
    %v154 = vld [vmem:[#allocation2 + $0x240] sm:$0xff]
    %v155 = vld [vmem:[#allocation2 + $0x248] sm:$0xff]
    %v156 = vld [vmem:[#allocation2 + $0x250] sm:$0xff]
    %v157 = vld [vmem:[#allocation2 + $0x258] sm:$0xff]
    %v158 = vld [vmem:[#allocation2 + $0x260] sm:$0xff]
    %v159 = vld [vmem:[#allocation2 + $0x268] sm:$0xff]
    %v160 = vld [vmem:[#allocation2 + $0x270] sm:$0xff]
    %v161 = vld [vmem:[#allocation2 + $0x278] sm:$0xff]
    %v162 = vld [vmem:[#allocation2 + $0x280] sm:$0xff]
    %v163 = vld [vmem:[#allocation2 + $0x288] sm:$0xff]
    %v164 = vld [vmem:[#allocation2 + $0x290] sm:$0xff]
    %v165 = vld [vmem:[#allocation2 + $0x298] sm:$0xff]
    %v166 = vld [vmem:[#allocation2 + $0x2a0] sm:$0xff]
    %v167 = vld [vmem:[#allocation2 + $0x2a8] sm:$0xff]
    %v168 = vld [vmem:[#allocation2 + $0x2b0] sm:$0xff]
    %v169 = vld [vmem:[#allocation2 + $0x2b8] sm:$0xff]
    %v170 = vld [vmem:[#allocation2 + $0x2c0] sm:$0xff]
    %v171 = vld [vmem:[#allocation2 + $0x2c8] sm:$0xff]
    %v172 = vld [vmem:[#allocation2 + $0x2d0] sm:$0xff]
    %v173 = vld [vmem:[#allocation2 + $0x2d8] sm:$0xff]
    %v174 = vld [vmem:[#allocation2 + $0x2e0] sm:$0xff]
    %v175 = vld [vmem:[#allocation2 + $0x2e8] sm:$0xff]
    %v176 = vld [vmem:[#allocation2 + $0x2f0] sm:$0xff]
    %v177 = vld [vmem:[#allocation2 + $0x2f8] sm:$0xff]
    %v178 = vld [vmem:[#allocation2 + $0x300] sm:$0xff]
    %v179 = vld [vmem:[#allocation2 + $0x308] sm:$0xff]
    %v180 = vld [vmem:[#allocation2 + $0x310] sm:$0xff]
    %v181 = vld [vmem:[#allocation2 + $0x318] sm:$0xff]
    %v182 = vld [vmem:[#allocation2 + $0x320] sm:$0xff]
    %v183 = vld [vmem:[#allocation2 + $0x328] sm:$0xff]
    %v184 = vld [vmem:[#allocation2 + $0x330] sm:$0xff]
    %v185 = vld [vmem:[#allocation2 + $0x338] sm:$0xff]
    %v186 = vld [vmem:[#allocation2 + $0x340] sm:$0xff]
    %v187 = vld [vmem:[#allocation2 + $0x348] sm:$0xff]
    %v188 = vld [vmem:[#allocation2 + $0x350] sm:$0xff]
    %v189 = vld [vmem:[#allocation2 + $0x358] sm:$0xff]
    %v190 = vld [vmem:[#allocation2 + $0x360] sm:$0xff]
    %v191 = vld [vmem:[#allocation2 + $0x368] sm:$0xff]
    %v192 = vld [vmem:[#allocation2 + $0x370] sm:$0xff]
    %v193 = vld [vmem:[#allocation2 + $0x378] sm:$0xff]
    %v194 = vld [vmem:[#allocation2 + $0x380] sm:$0xff]
    %v195 = vld [vmem:[#allocation2 + $0x388] sm:$0xff]
    %v196 = vld [vmem:[#allocation2 + $0x390] sm:$0xff]
    %v197 = vld [vmem:[#allocation2 + $0x398] sm:$0xff]
    %v198 = vld [vmem:[#allocation2 + $0x3a0] sm:$0xff]
    %v199 = vld [vmem:[#allocation2 + $0x3a8] sm:$0xff]
    %v200 = vld [vmem:[#allocation2 + $0x3b0] sm:$0xff]
    %v201 = vld [vmem:[#allocation2 + $0x3b8] sm:$0xff]
    %v202 = vld [vmem:[#allocation2 + $0x3c0] sm:$0xff]
    %v203 = vld [vmem:[#allocation2 + $0x3c8] sm:$0xff]
    %v204 = vld [vmem:[#allocation2 + $0x3d0] sm:$0xff]
    %v205 = vld [vmem:[#allocation2 + $0x3d8] sm:$0xff]
    %v206 = vld [vmem:[#allocation2 + $0x3e0] sm:$0xff]
    %v207 = vld [vmem:[#allocation2 + $0x3e8] sm:$0xff]
    %v208 = vld [vmem:[#allocation2 + $0x3f0] sm:$0xff]
    %v209 = vld [vmem:[#allocation2 + $0x3f8] sm:$0xff]
    %v210 = vld [vmem:[#allocation2 + $0x400] sm:$0xff]
    %v211 = vld [vmem:[#allocation2 + $0x408] sm:$0xff]
    %v212 = vld [vmem:[#allocation2 + $0x410] sm:$0xff]
    %v213 = vld [vmem:[#allocation2 + $0x418] sm:$0xff]
    %v214 = vld [vmem:[#allocation2 + $0x420] sm:$0xff]
    %v215 = vld [vmem:[#allocation2 + $0x428] sm:$0xff]
    %v216 = vld [vmem:[#allocation2 + $0x430] sm:$0xff]
    %v217 = vld [vmem:[#allocation2 + $0x438] sm:$0xff]
    %v218 = vld [vmem:[#allocation2 + $0x440] sm:$0xff]
    %v219 = vld [vmem:[#allocation2 + $0x448] sm:$0xff]
    %v220 = vld [vmem:[#allocation2 + $0x450] sm:$0xff]
    %v221 = vld [vmem:[#allocation2 + $0x458] sm:$0xff]
    %v222 = vld [vmem:[#allocation2 + $0x460] sm:$0xff]
    %v223 = vld [vmem:[#allocation2 + $0x468] sm:$0xff]
    %v224 = vld [vmem:[#allocation2 + $0x470] sm:$0xff]
    %v225 = vld [vmem:[#allocation2 + $0x478] sm:$0xff]
    %v226 = vld [vmem:[#allocation2 + $0x480] sm:$0xff]
    %v227 = vld [vmem:[#allocation2 + $0x488] sm:$0xff]
    %v228 = vld [vmem:[#allocation2 + $0x490] sm:$0xff]
    %v229 = vld [vmem:[#allocation2 + $0x498] sm:$0xff]
    %v230 = vld [vmem:[#allocation2 + $0x4a0] sm:$0xff]
    %v231 = vld [vmem:[#allocation2 + $0x4a8] sm:$0xff]
    %v232 = vld [vmem:[#allocation2 + $0x4b0] sm:$0xff]
    %v233 = vld [vmem:[#allocation2 + $0x4b8] sm:$0xff]
    %v234 = vld [vmem:[#allocation2 + $0x4c0] sm:$0xff]
    %v235 = vld [vmem:[#allocation2 + $0x4c8] sm:$0xff]
    %v236 = vld [vmem:[#allocation2 + $0x4d0] sm:$0xff]
    %v237 = vld [vmem:[#allocation2 + $0x4d8] sm:$0xff]
    %v238 = vld [vmem:[#allocation2 + $0x4e0] sm:$0xff]
    %v239 = vld [vmem:[#allocation2 + $0x4e8] sm:$0xff]
    %v240 = vld [vmem:[#allocation2 + $0x4f0] sm:$0xff]
    %v241 = vld [vmem:[#allocation2 + $0x4f8] sm:$0xff]
    %v242 = vld [vmem:[#allocation2 + $0x500] sm:$0xff]
    %v243 = vld [vmem:[#allocation2 + $0x508] sm:$0xff]
    %v244 = vld [vmem:[#allocation2 + $0x510] sm:$0xff]
    %v245 = vld [vmem:[#allocation2 + $0x518] sm:$0xff]
    %v246 = vld [vmem:[#allocation2 + $0x520] sm:$0xff]
    %v247 = vld [vmem:[#allocation2 + $0x528] sm:$0xff]
    %v248 = vld [vmem:[#allocation2 + $0x530] sm:$0xff]
    %v249 = vld [vmem:[#allocation2 + $0x538] sm:$0xff]
    %v250 = vld [vmem:[#allocation2 + $0x540] sm:$0xff]
    %v251 = vld [vmem:[#allocation2 + $0x548] sm:$0xff]
    %v252 = vld [vmem:[#allocation2 + $0x550] sm:$0xff]
    %v253 = vld [vmem:[#allocation2 + $0x558] sm:$0xff]
    %v254 = vld [vmem:[#allocation2 + $0x560] sm:$0xff]
    %v255 = vld [vmem:[#allocation2 + $0x568] sm:$0xff]
    %v256 = vld [vmem:[#allocation2 + $0x570] sm:$0xff]
    %v257 = vld [vmem:[#allocation2 + $0x578] sm:$0xff]
    %v258 = vld [vmem:[#allocation2 + $0x580] sm:$0xff]
    %v259 = vld [vmem:[#allocation2 + $0x588] sm:$0xff]
    %v260 = vld [vmem:[#allocation2 + $0x590] sm:$0xff]
    %v261 = vld [vmem:[#allocation2 + $0x598] sm:$0xff]
    %v262 = vld [vmem:[#allocation2 + $0x5a0] sm:$0xff]
    %v263 = vld [vmem:[#allocation2 + $0x5a8] sm:$0xff]
    %v264 = vld [vmem:[#allocation2 + $0x5b0] sm:$0xff]
    %v265 = vld [vmem:[#allocation2 + $0x5b8] sm:$0xff]
    %v266 = vld [vmem:[#allocation2 + $0x5c0] sm:$0xff]
    %v267 = vld [vmem:[#allocation2 + $0x5c8] sm:$0xff]
    %v268 = vld [vmem:[#allocation2 + $0x5d0] sm:$0xff]
    %v269 = vld [vmem:[#allocation2 + $0x5d8] sm:$0xff]
    %v270 = vld [vmem:[#allocation2 + $0x5e0] sm:$0xff]
    %v271 = vld [vmem:[#allocation2 + $0x5e8] sm:$0xff]
    %v272 = vld [vmem:[#allocation2 + $0x5f0] sm:$0xff]
    %v273 = vld [vmem:[#allocation2 + $0x5f8] sm:$0xff]
    %v274 = vld [vmem:[#allocation2 + $0x600] sm:$0xff]
    %v275 = vld [vmem:[#allocation2 + $0x608] sm:$0xff]
    %v276 = vld [vmem:[#allocation2 + $0x610] sm:$0xff]
    %v277 = vld [vmem:[#allocation2 + $0x618] sm:$0xff]
    %v278 = vld [vmem:[#allocation2 + $0x620] sm:$0xff]
    %v279 = vld [vmem:[#allocation2 + $0x628] sm:$0xff]
    %v280 = vld [vmem:[#allocation2 + $0x630] sm:$0xff]
    %v281 = vld [vmem:[#allocation2 + $0x638] sm:$0xff]
    %v282 = vld [vmem:[#allocation2 + $0x640] sm:$0xff]
    %v283 = vld [vmem:[#allocation2 + $0x648] sm:$0xff]
    %v284 = vld [vmem:[#allocation2 + $0x650] sm:$0xff]
    %v285 = vld [vmem:[#allocation2 + $0x658] sm:$0xff]
    %v286 = vld [vmem:[#allocation2 + $0x660] sm:$0xff]
    %v287 = vld [vmem:[#allocation2 + $0x668] sm:$0xff]
    %v288 = vld [vmem:[#allocation2 + $0x670] sm:$0xff]
    %v289 = vld [vmem:[#allocation2 + $0x678] sm:$0xff]
    %v290 = vld [vmem:[#allocation2 + $0x680] sm:$0xff]
    %v291 = vld [vmem:[#allocation2 + $0x688] sm:$0xff]
    %v292 = vld [vmem:[#allocation2 + $0x690] sm:$0xff]
    %v293 = vld [vmem:[#allocation2 + $0x698] sm:$0xff]
    %v294 = vld [vmem:[#allocation2 + $0x6a0] sm:$0xff]
    %v295 = vld [vmem:[#allocation2 + $0x6a8] sm:$0xff]
    %v296 = vld [vmem:[#allocation2 + $0x6b0] sm:$0xff]
    %v297 = vld [vmem:[#allocation2 + $0x6b8] sm:$0xff]
    %v298 = vld [vmem:[#allocation2 + $0x6c0] sm:$0xff]
    %v299 = vld [vmem:[#allocation2 + $0x6c8] sm:$0xff]
    %v300 = vld [vmem:[#allocation2 + $0x6d0] sm:$0xff]
    %v301 = vld [vmem:[#allocation2 + $0x6d8] sm:$0xff]
    %v302 = vld [vmem:[#allocation2 + $0x6e0] sm:$0xff]
    %v303 = vld [vmem:[#allocation2 + $0x6e8] sm:$0xff]
    %v304 = vld [vmem:[#allocation2 + $0x6f0] sm:$0xff]
    %v305 = vld [vmem:[#allocation2 + $0x6f8] sm:$0xff]
    %v306 = vld [vmem:[%s4] sm:$0xf]
    %v307 = vld [vmem:[#allocation4] sm:$0xff]
    %v308 = vld [vmem:[#allocation4 + $0x8] sm:$0xff]
    %v309 = vld [vmem:[#allocation4 + $0x10] sm:$0xff]
    %v310 = vld [vmem:[#allocation4 + $0x18] sm:$0xff]
    %v311 = vld [vmem:[#allocation4 + $0x20] sm:$0xff]
    %v312 = vld [vmem:[#allocation4 + $0x28] sm:$0xff]
    %v313 = vld [vmem:[#allocation4 + $0x30] sm:$0xff]
    %v314 = vld [vmem:[#allocation4 + $0x38] sm:$0xff]
    %v315 = vld [vmem:[#allocation4 + $0x40] sm:$0xff]
    %v316 = vld [vmem:[#allocation4 + $0x48] sm:$0xff]
    %v317 = vld [vmem:[#allocation4 + $0x50] sm:$0xff]
    %v318 = vld [vmem:[#allocation4 + $0x58] sm:$0xff]
    %v319 = vld [vmem:[#allocation4 + $0x60] sm:$0xff]
    %v320 = vld [vmem:[#allocation4 + $0x68] sm:$0xff]
    %v321 = vld [vmem:[#allocation4 + $0x70] sm:$0xff]
    %v322 = vld [vmem:[#allocation4 + $0x78] sm:$0xff]
    %v323 = vld [vmem:[#allocation4 + $0x80] sm:$0xff]
    %v324 = vld [vmem:[#allocation4 + $0x88] sm:$0xff]
    %v325 = vld [vmem:[#allocation4 + $0x90] sm:$0xff]
    %v326 = vld [vmem:[#allocation4 + $0x98] sm:$0xff]
    %v327 = vld [vmem:[#allocation4 + $0xa0] sm:$0xff]
    %v328 = vld [vmem:[#allocation4 + $0xa8] sm:$0xff]
    %v329 = vld [vmem:[#allocation4 + $0xb0] sm:$0xff]
    %v330 = vld [vmem:[#allocation4 + $0xb8] sm:$0xff]
    %v331 = vld [vmem:[#allocation4 + $0xc0] sm:$0xff]
    %v332 = vld [vmem:[#allocation4 + $0xc8] sm:$0xff]
    %v333 = vld [vmem:[#allocation4 + $0xd0] sm:$0xff]
    %v334 = vld [vmem:[#allocation4 + $0xd8] sm:$0xff]
    %v335 = vld [vmem:[#allocation4 + $0xe0] sm:$0xff]
    %v336 = vld [vmem:[#allocation4 + $0xe8] sm:$0xff]
    %v337 = vld [vmem:[#allocation4 + $0xf0] sm:$0xff]
    %v338 = vld [vmem:[#allocation4 + $0xf8] sm:$0xff]
    %v339 = vld [vmem:[#allocation4 + $0x100] sm:$0xff]
    %v340 = vld [vmem:[#allocation4 + $0x108] sm:$0xff]
    %v341 = vld [vmem:[#allocation4 + $0x110] sm:$0xff]
    %v342 = vld [vmem:[#allocation4 + $0x118] sm:$0xff]
    %v343 = vld [vmem:[#allocation4 + $0x120] sm:$0xff]
    %v344 = vld [vmem:[#allocation4 + $0x128] sm:$0xff]
    %v345 = vld [vmem:[#allocation4 + $0x130] sm:$0xff]
    %v346 = vld [vmem:[#allocation4 + $0x138] sm:$0xff]
    %v347 = vld [vmem:[#allocation4 + $0x140] sm:$0xff]
    %v348 = vld [vmem:[#allocation4 + $0x148] sm:$0xff]
    %v349 = vld [vmem:[#allocation4 + $0x150] sm:$0xff]
    %v350 = vld [vmem:[#allocation4 + $0x158] sm:$0xff]
    %v351 = vld [vmem:[#allocation4 + $0x160] sm:$0xff]
    %v352 = vld [vmem:[#allocation4 + $0x168] sm:$0xff]
    %v353 = vld [vmem:[#allocation4 + $0x170] sm:$0xff]
    %v354 = vld [vmem:[#allocation4 + $0x178] sm:$0xff]
    %v355 = vld [vmem:[#allocation4 + $0x180] sm:$0xff]
    %v356 = vld [vmem:[#allocation4 + $0x188] sm:$0xff]
    %v357 = vld [vmem:[#allocation4 + $0x190] sm:$0xff]
    %v358 = vld [vmem:[#allocation4 + $0x198] sm:$0xff]
    %v359 = vld [vmem:[#allocation4 + $0x1a0] sm:$0xff]
    %v360 = vld [vmem:[#allocation4 + $0x1a8] sm:$0xff]
    %v361 = vld [vmem:[#allocation4 + $0x1b0] sm:$0xff]
    %v362 = vld [vmem:[#allocation4 + $0x1b8] sm:$0xff]
    %v363 = vld [vmem:[#allocation4 + $0x1c0] sm:$0xff]
    %v364 = vld [vmem:[#allocation4 + $0x1c8] sm:$0xff]
    %v365 = vld [vmem:[#allocation4 + $0x1d0] sm:$0xff]
    %v366 = vld [vmem:[#allocation4 + $0x1d8] sm:$0xff]
    %v367 = vld [vmem:[#allocation4 + $0x1e0] sm:$0xff]
    %v368 = vld [vmem:[#allocation4 + $0x1e8] sm:$0xff]
    %v369 = vld [vmem:[#allocation4 + $0x1f0] sm:$0xff]
    %v370 = vld [vmem:[#allocation4 + $0x1f8] sm:$0xff]
    %v371 = vld [vmem:[%s6] sm:$0x3]
    %v372 = vld [vmem:[%s7] sm:$0xf]
    %v373 = vld [vmem:[%s7 + $0x4] sm:$0xf]
    %v374 = vld [vmem:[%s7 + $0x8] sm:$0xf]
    %v375 = vld [vmem:[%s7 + $0xc] sm:$0xf]
    %v376 = vld [vmem:[%s7 + $0x10] sm:$0xf]
    %v377 = vld [vmem:[%s7 + $0x14] sm:$0xf]
    %v378 = vld [vmem:[%s7 + $0x18] sm:$0xf]
    %v379 = vld [vmem:[%s7 + $0x1c] sm:$0xf]
    %v380 = vld [vmem:[%s7 + $0x20] sm:$0xf]
    %v381 = vld [vmem:[%s7 + $0x24] sm:$0xf]
    %v382 = vld [vmem:[%s7 + $0x28] sm:$0xf]
    %v383 = vld [vmem:[%s7 + $0x2c] sm:$0xf]
    %v384 = vld [vmem:[%s7 + $0x30] sm:$0xf]
    %v385 = vld [vmem:[%s7 + $0x34] sm:$0xf]
    %v386 = vld [vmem:[%s7 + $0x38] sm:$0xf]
    %v387 = vld [vmem:[%s7 + $0x3c] sm:$0xf]
    %v388 = vld [vmem:[%s7 + $0x40] sm:$0xf]
    %v389 = vld [vmem:[%s7 + $0x44] sm:$0xf]
    %v390 = vld [vmem:[%s7 + $0x48] sm:$0xf]
    %v391 = vld [vmem:[%s7 + $0x4c] sm:$0xf]
    %v392 = vld [vmem:[%s7 + $0x50] sm:$0xf]
    %v393 = vld [vmem:[%s7 + $0x54] sm:$0xf]
    %v394 = vld [vmem:[%s7 + $0x58] sm:$0xf]
    %v395 = vld [vmem:[%s7 + $0x5c] sm:$0xf]
    %v396 = vld [vmem:[%s7 + $0x60] sm:$0xf]
    %v397 = vld [vmem:[%s7 + $0x64] sm:$0xf]
    %v398 = vld [vmem:[%s7 + $0x68] sm:$0xf]
    %v399 = vld [vmem:[%s7 + $0x6c] sm:$0xf]
    %v400 = vld [vmem:[%s7 + $0x70] sm:$0xf]
    %v401 = vld [vmem:[%s7 + $0x74] sm:$0xf]
    %v402 = vld [vmem:[%s7 + $0x78] sm:$0xf]
    %v403 = vld [vmem:[%s7 + $0x7c] sm:$0xf]
    %v404 = vld [vmem:[%s8] sm:$0x1]
    %v405 = vld [vmem:[%s0] sm:$0xff]
    %v406 = vpack.c.bf16 %v405, %v405
    %v408 = vperm.slane %v81, 0
    %v409 = vperm.slane %v81, 1
    %v410 = vperm.slane %v81, 2
    %v411 = vperm.slane %v81, 3
    %v412 = vperm.slane %v81, 4
    %v413 = vperm.slane %v81, 5
    %v414 = vperm.slane %v81, 6
    %v438 = vunpack.c.l.b16 %v65
    %v439 = vunpack.c.h.b16 %v65
    %v440 = vunpack.c.l.b16 %v66
    %v441 = vunpack.c.h.b16 %v66
    %v442 = vunpack.c.l.b16 %v67
    %v443 = vunpack.c.h.b16 %v67
    %v444 = vunpack.c.l.b16 %v68
    %v445 = vunpack.c.l.b16 %v69
    %v446 = vunpack.c.h.b16 %v69
    %v447 = vunpack.c.l.b16 %v70
    %v448 = vunpack.c.h.b16 %v70
    %v449 = vunpack.c.l.b16 %v71
    %v450 = vunpack.c.h.b16 %v71
    %v451 = vunpack.c.l.b16 %v72
    %v452 = vunpack.c.l.b16 %v73
    %v453 = vunpack.c.h.b16 %v73
    %v454 = vunpack.c.l.b16 %v74
    %v455 = vunpack.c.h.b16 %v74
    %v456 = vunpack.c.l.b16 %v75
    %v457 = vunpack.c.h.b16 %v75
    %v458 = vunpack.c.l.b16 %v76
    %v459 = vunpack.c.l.b16 %v77
    %v460 = vunpack.c.h.b16 %v77
    %v461 = vunpack.c.l.b16 %v78
    %v462 = vunpack.c.h.b16 %v78
    %v463 = vunpack.c.l.b16 %v79
    %v464 = vunpack.c.h.b16 %v79
    %v465 = vunpack.c.l.b16 %v80
    %v466 = vpack.c.b16 %v445, %v438
    %v467 = vpack.c.b16 %v446, %v439
    %v468 = vpack.c.b16 %v447, %v440
    %v469 = vpack.c.b16 %v448, %v441
    %v470 = vpack.c.b16 %v449, %v442
    %v471 = vpack.c.b16 %v450, %v443
    %v472 = vpack.c.b16 %v451, %v444
    %v473 = vpack.c.b16 %v459, %v452
    %v474 = vpack.c.b16 %v460, %v453
    %v475 = vpack.c.b16 %v461, %v454
    %v476 = vpack.c.b16 %v462, %v455
    %v477 = vpack.c.b16 %v463, %v456
    %v478 = vpack.c.b16 %v464, %v457
    %v479 = vpack.c.b16 %v465, %v458
    %vm494 = vcmask 261120
    %v496 = vsel %vm494, %v406, 0
    %498 = vmatpush.bf16.msra.mxu0 0
    %499 = vmatpush.bf16.msra.mxu0 0
    %500 = vmatpush.bf16.msra.mxu0 0
    %501 = vmatpush.bf16.msra.mxu0 0
    %502 = vmatpush.bf16.msra.mxu0 0
    %503 = vmatpush.bf16.msra.mxu0 0
    %504 = vmatpush.bf16.msra.mxu0 %v473
    %505 = vmatpush.bf16.msra.mxu0 %v466
    %506 = vmatmul.bf16.gmra.mxu0 %v496
    %v507 = vpop.f32.mrf.mxu0
    %v508 = vadd.f32 %v408, %v507
    %v509 = vpop.f32.mrf.mxu0
    %510 = vdwg.mxu0
    %511 = vmatpush.bf16.msra.mxu0 0
    %512 = vmatpush.bf16.msra.mxu0 0
    %513 = vmatpush.bf16.msra.mxu0 0
    %514 = vmatpush.bf16.msra.mxu0 0
    %515 = vmatpush.bf16.msra.mxu0 0
    %516 = vmatpush.bf16.msra.mxu0 0
    %517 = vmatpush.bf16.msra.mxu0 %v474
    %518 = vmatpush.bf16.msra.mxu0 %v467
    %519 = vmatmul.bf16.gmra.mxu0 %v496
    %v520 = vpop.f32.mrf.mxu0
    %v521 = vadd.f32 %v409, %v520
    %v522 = vpop.f32.mrf.mxu0
    %523 = vdwg.mxu0
    %524 = vmatpush.bf16.msra.mxu0 0
    %525 = vmatpush.bf16.msra.mxu0 0
    %526 = vmatpush.bf16.msra.mxu0 0
    %527 = vmatpush.bf16.msra.mxu0 0
    %528 = vmatpush.bf16.msra.mxu0 0
    %529 = vmatpush.bf16.msra.mxu0 0
    %530 = vmatpush.bf16.msra.mxu0 %v475
    %531 = vmatpush.bf16.msra.mxu0 %v468
    %532 = vmatmul.bf16.gmra.mxu0 %v496
    %v533 = vpop.f32.mrf.mxu0
    %v534 = vadd.f32 %v410, %v533
    %v535 = vpop.f32.mrf.mxu0
    %536 = vdwg.mxu0
    %537 = vmatpush.bf16.msra.mxu0 0
    %538 = vmatpush.bf16.msra.mxu0 0
    %539 = vmatpush.bf16.msra.mxu0 0
    %540 = vmatpush.bf16.msra.mxu0 0
    %541 = vmatpush.bf16.msra.mxu0 0
    %542 = vmatpush.bf16.msra.mxu0 0
    %543 = vmatpush.bf16.msra.mxu0 %v476
    %544 = vmatpush.bf16.msra.mxu0 %v469
    %545 = vmatmul.bf16.gmra.mxu0 %v496
    %v546 = vpop.f32.mrf.mxu0
    %v547 = vadd.f32 %v411, %v546
    %v548 = vpop.f32.mrf.mxu0
    %549 = vdwg.mxu0
    %550 = vmatpush.bf16.msra.mxu0 0
    %551 = vmatpush.bf16.msra.mxu0 0
    %552 = vmatpush.bf16.msra.mxu0 0
    %553 = vmatpush.bf16.msra.mxu0 0
    %554 = vmatpush.bf16.msra.mxu0 0
    %555 = vmatpush.bf16.msra.mxu0 0
    %556 = vmatpush.bf16.msra.mxu0 %v477
    %557 = vmatpush.bf16.msra.mxu0 %v470
    %558 = vmatmul.bf16.gmra.mxu0 %v496
    %v559 = vpop.f32.mrf.mxu0
    %v560 = vadd.f32 %v412, %v559
    %v561 = vpop.f32.mrf.mxu0
    %562 = vdwg.mxu0
    %563 = vmatpush.bf16.msra.mxu0 0
    %564 = vmatpush.bf16.msra.mxu0 0
    %565 = vmatpush.bf16.msra.mxu0 0
    %566 = vmatpush.bf16.msra.mxu0 0
    %567 = vmatpush.bf16.msra.mxu0 0
    %568 = vmatpush.bf16.msra.mxu0 0
    %569 = vmatpush.bf16.msra.mxu0 %v478
    %570 = vmatpush.bf16.msra.mxu0 %v471
    %571 = vmatmul.bf16.gmra.mxu0 %v496
    %v572 = vpop.f32.mrf.mxu0
    %v573 = vadd.f32 %v413, %v572
    %v574 = vpop.f32.mrf.mxu0
    %575 = vdwg.mxu0
    %576 = vmatpush.bf16.msra.mxu0 0
    %577 = vmatpush.bf16.msra.mxu0 0
    %578 = vmatpush.bf16.msra.mxu0 0
    %579 = vmatpush.bf16.msra.mxu0 0
    %580 = vmatpush.bf16.msra.mxu0 0
    %581 = vmatpush.bf16.msra.mxu0 0
    %582 = vmatpush.bf16.msra.mxu0 %v479
    %583 = vmatpush.bf16.msra.mxu0 %v472
    %584 = vmatmul.bf16.gmra.mxu0 %v496
    %v585 = vpop.f32.mrf.mxu0
    %v586 = vadd.f32 %v414, %v585
    %v587 = vpop.f32.mrf.mxu0
    %588 = vdwg.mxu0
    %v589 = vtanh.pop %v508
    %v590 = vtanh.pop %v521
    %v591 = vtanh.pop %v534
    %v592 = vtanh.pop %v547
    %v593 = vtanh.pop %v560
    %v594 = vtanh.pop %v573
    %v595 = vtanh.pop %v586
    %v596 = vpack.c.bf16 %v589, %v589
    %v597 = vpack.c.bf16 %v590, %v590
    %v598 = vpack.c.bf16 %v591, %v591
    %v599 = vpack.c.bf16 %v592, %v592
    %v600 = vpack.c.bf16 %v593, %v593
    %v601 = vpack.c.bf16 %v594, %v594
    %v602 = vpack.c.bf16 %v595, %v595
    %v604 = vperm.slane %v306, 0
    %v605 = vperm.slane %v306, 1
    %v606 = vperm.slane %v306, 2
    %v607 = vperm.slane %v306, 3
    %v836 = vunpack.c.l.b16 %v82
    %v837 = vunpack.c.h.b16 %v82
    %v838 = vunpack.c.l.b16 %v83
    %v839 = vunpack.c.h.b16 %v83
    %v840 = vunpack.c.l.b16 %v84
    %v841 = vunpack.c.h.b16 %v84
    %v842 = vunpack.c.l.b16 %v85
    %v843 = vunpack.c.h.b16 %v85
    %v844 = vunpack.c.l.b16 %v86
    %v845 = vunpack.c.h.b16 %v86
    %v846 = vunpack.c.l.b16 %v87
    %v847 = vunpack.c.h.b16 %v87
    %v848 = vunpack.c.l.b16 %v88
    %v849 = vunpack.c.h.b16 %v88
    %v850 = vunpack.c.l.b16 %v89
    %v851 = vunpack.c.h.b16 %v89
    %v852 = vunpack.c.l.b16 %v90
    %v853 = vunpack.c.h.b16 %v90
    %v854 = vunpack.c.l.b16 %v91
    %v855 = vunpack.c.h.b16 %v91
    %v856 = vunpack.c.l.b16 %v92
    %v857 = vunpack.c.h.b16 %v92
    %v858 = vunpack.c.l.b16 %v93
    %v859 = vunpack.c.h.b16 %v93
    %v860 = vunpack.c.l.b16 %v94
    %v861 = vunpack.c.h.b16 %v94
    %v862 = vunpack.c.l.b16 %v95
    %v863 = vunpack.c.h.b16 %v95
    %v864 = vunpack.c.l.b16 %v96
    %v865 = vunpack.c.h.b16 %v96
    %v866 = vunpack.c.l.b16 %v97
    %v867 = vunpack.c.h.b16 %v97
    %v868 = vunpack.c.l.b16 %v98
    %v869 = vunpack.c.h.b16 %v98
    %v870 = vunpack.c.l.b16 %v99
    %v871 = vunpack.c.h.b16 %v99
    %v872 = vunpack.c.l.b16 %v100
    %v873 = vunpack.c.h.b16 %v100
    %v874 = vunpack.c.l.b16 %v101
    %v875 = vunpack.c.h.b16 %v101
    %v876 = vunpack.c.l.b16 %v102
    %v877 = vunpack.c.h.b16 %v102
    %v878 = vunpack.c.l.b16 %v103
    %v879 = vunpack.c.h.b16 %v103
    %v880 = vunpack.c.l.b16 %v104
    %v881 = vunpack.c.h.b16 %v104
    %v882 = vunpack.c.l.b16 %v105
    %v883 = vunpack.c.h.b16 %v105
    %v884 = vunpack.c.l.b16 %v106
    %v885 = vunpack.c.h.b16 %v106
    %v886 = vunpack.c.l.b16 %v107
    %v887 = vunpack.c.h.b16 %v107
    %v888 = vunpack.c.l.b16 %v108
    %v889 = vunpack.c.h.b16 %v108
    %v890 = vunpack.c.l.b16 %v109
    %v891 = vunpack.c.h.b16 %v109
    %v892 = vunpack.c.l.b16 %v110
    %v893 = vunpack.c.h.b16 %v110
    %v894 = vunpack.c.l.b16 %v111
    %v895 = vunpack.c.h.b16 %v111
    %v896 = vunpack.c.l.b16 %v112
    %v897 = vunpack.c.h.b16 %v112
    %v898 = vunpack.c.l.b16 %v113
    %v899 = vunpack.c.h.b16 %v113
    %v900 = vunpack.c.l.b16 %v114
    %v901 = vunpack.c.h.b16 %v114
    %v902 = vunpack.c.l.b16 %v115
    %v903 = vunpack.c.h.b16 %v115
    %v904 = vunpack.c.l.b16 %v116
    %v905 = vunpack.c.h.b16 %v116
    %v906 = vunpack.c.l.b16 %v117
    %v907 = vunpack.c.h.b16 %v117
    %v908 = vunpack.c.l.b16 %v118
    %v909 = vunpack.c.h.b16 %v118
    %v910 = vunpack.c.l.b16 %v119
    %v911 = vunpack.c.h.b16 %v119
    %v912 = vunpack.c.l.b16 %v120
    %v913 = vunpack.c.h.b16 %v120
    %v914 = vunpack.c.l.b16 %v121
    %v915 = vunpack.c.h.b16 %v121
    %v916 = vunpack.c.l.b16 %v122
    %v917 = vunpack.c.h.b16 %v122
    %v918 = vunpack.c.l.b16 %v123
    %v919 = vunpack.c.h.b16 %v123
    %v920 = vunpack.c.l.b16 %v124
    %v921 = vunpack.c.h.b16 %v124
    %v922 = vunpack.c.l.b16 %v125
    %v923 = vunpack.c.h.b16 %v125
    %v924 = vunpack.c.l.b16 %v126
    %v925 = vunpack.c.h.b16 %v126
    %v926 = vunpack.c.l.b16 %v127
    %v927 = vunpack.c.h.b16 %v127
    %v928 = vunpack.c.l.b16 %v128
    %v929 = vunpack.c.h.b16 %v128
    %v930 = vunpack.c.l.b16 %v129
    %v931 = vunpack.c.h.b16 %v129
    %v932 = vunpack.c.l.b16 %v130
    %v933 = vunpack.c.h.b16 %v130
    %v934 = vunpack.c.l.b16 %v131
    %v935 = vunpack.c.h.b16 %v131
    %v936 = vunpack.c.l.b16 %v132
    %v937 = vunpack.c.h.b16 %v132
    %v938 = vunpack.c.l.b16 %v133
    %v939 = vunpack.c.h.b16 %v133
    %v940 = vunpack.c.l.b16 %v134
    %v941 = vunpack.c.h.b16 %v134
    %v942 = vunpack.c.l.b16 %v135
    %v943 = vunpack.c.h.b16 %v135
    %v944 = vunpack.c.l.b16 %v136
    %v945 = vunpack.c.h.b16 %v136
    %v946 = vunpack.c.l.b16 %v137
    %v947 = vunpack.c.h.b16 %v137
    %v948 = vunpack.c.l.b16 %v138
    %v949 = vunpack.c.h.b16 %v138
    %v950 = vunpack.c.l.b16 %v139
    %v951 = vunpack.c.h.b16 %v139
    %v952 = vunpack.c.l.b16 %v140
    %v953 = vunpack.c.h.b16 %v140
    %v954 = vunpack.c.l.b16 %v141
    %v955 = vunpack.c.h.b16 %v141
    %v956 = vunpack.c.l.b16 %v142
    %v957 = vunpack.c.h.b16 %v142
    %v958 = vunpack.c.l.b16 %v143
    %v959 = vunpack.c.h.b16 %v143
    %v960 = vunpack.c.l.b16 %v144
    %v961 = vunpack.c.h.b16 %v144
    %v962 = vunpack.c.l.b16 %v145
    %v963 = vunpack.c.h.b16 %v145
    %v964 = vunpack.c.l.b16 %v146
    %v965 = vunpack.c.h.b16 %v146
    %v966 = vunpack.c.l.b16 %v147
    %v967 = vunpack.c.h.b16 %v147
    %v968 = vunpack.c.l.b16 %v148
    %v969 = vunpack.c.h.b16 %v148
    %v970 = vunpack.c.l.b16 %v149
    %v971 = vunpack.c.h.b16 %v149
    %v972 = vunpack.c.l.b16 %v150
    %v973 = vunpack.c.h.b16 %v150
    %v974 = vunpack.c.l.b16 %v151
    %v975 = vunpack.c.h.b16 %v151
    %v976 = vunpack.c.l.b16 %v152
    %v977 = vunpack.c.h.b16 %v152
    %v978 = vunpack.c.l.b16 %v153
    %v979 = vunpack.c.h.b16 %v153
    %v980 = vunpack.c.l.b16 %v154
    %v981 = vunpack.c.h.b16 %v154
    %v982 = vunpack.c.l.b16 %v155
    %v983 = vunpack.c.h.b16 %v155
    %v984 = vunpack.c.l.b16 %v156
    %v985 = vunpack.c.h.b16 %v156
    %v986 = vunpack.c.l.b16 %v157
    %v987 = vunpack.c.h.b16 %v157
    %v988 = vunpack.c.l.b16 %v158
    %v989 = vunpack.c.h.b16 %v158
    %v990 = vunpack.c.l.b16 %v159
    %v991 = vunpack.c.h.b16 %v159
    %v992 = vunpack.c.l.b16 %v160
    %v993 = vunpack.c.h.b16 %v160
    %v994 = vunpack.c.l.b16 %v161
    %v995 = vunpack.c.h.b16 %v161
    %v996 = vunpack.c.l.b16 %v162
    %v997 = vunpack.c.h.b16 %v162
    %v998 = vunpack.c.l.b16 %v163
    %v999 = vunpack.c.h.b16 %v163
    %v1000 = vunpack.c.l.b16 %v164
    %v1001 = vunpack.c.h.b16 %v164
    %v1002 = vunpack.c.l.b16 %v165
    %v1003 = vunpack.c.h.b16 %v165
    %v1004 = vunpack.c.l.b16 %v166
    %v1005 = vunpack.c.h.b16 %v166
    %v1006 = vunpack.c.l.b16 %v167
    %v1007 = vunpack.c.h.b16 %v167
    %v1008 = vunpack.c.l.b16 %v168
    %v1009 = vunpack.c.h.b16 %v168
    %v1010 = vunpack.c.l.b16 %v169
    %v1011 = vunpack.c.h.b16 %v169
    %v1012 = vunpack.c.l.b16 %v170
    %v1013 = vunpack.c.h.b16 %v170
    %v1014 = vunpack.c.l.b16 %v171
    %v1015 = vunpack.c.h.b16 %v171
    %v1016 = vunpack.c.l.b16 %v172
    %v1017 = vunpack.c.h.b16 %v172
    %v1018 = vunpack.c.l.b16 %v173
    %v1019 = vunpack.c.h.b16 %v173
    %v1020 = vunpack.c.l.b16 %v174
    %v1021 = vunpack.c.h.b16 %v174
    %v1022 = vunpack.c.l.b16 %v175
    %v1023 = vunpack.c.h.b16 %v175
    %v1024 = vunpack.c.l.b16 %v176
    %v1025 = vunpack.c.h.b16 %v176
    %v1026 = vunpack.c.l.b16 %v177
    %v1027 = vunpack.c.h.b16 %v177
    %v1028 = vunpack.c.l.b16 %v178
    %v1029 = vunpack.c.h.b16 %v178
    %v1030 = vunpack.c.l.b16 %v179
    %v1031 = vunpack.c.h.b16 %v179
    %v1032 = vunpack.c.l.b16 %v180
    %v1033 = vunpack.c.h.b16 %v180
    %v1034 = vunpack.c.l.b16 %v181
    %v1035 = vunpack.c.h.b16 %v181
    %v1036 = vunpack.c.l.b16 %v182
    %v1037 = vunpack.c.h.b16 %v182
    %v1038 = vunpack.c.l.b16 %v183
    %v1039 = vunpack.c.h.b16 %v183
    %v1040 = vunpack.c.l.b16 %v184
    %v1041 = vunpack.c.h.b16 %v184
    %v1042 = vunpack.c.l.b16 %v185
    %v1043 = vunpack.c.h.b16 %v185
    %v1044 = vunpack.c.l.b16 %v186
    %v1045 = vunpack.c.h.b16 %v186
    %v1046 = vunpack.c.l.b16 %v187
    %v1047 = vunpack.c.h.b16 %v187
    %v1048 = vunpack.c.l.b16 %v188
    %v1049 = vunpack.c.h.b16 %v188
    %v1050 = vunpack.c.l.b16 %v189
    %v1051 = vunpack.c.h.b16 %v189
    %v1052 = vunpack.c.l.b16 %v190
    %v1053 = vunpack.c.h.b16 %v190
    %v1054 = vunpack.c.l.b16 %v191
    %v1055 = vunpack.c.h.b16 %v191
    %v1056 = vunpack.c.l.b16 %v192
    %v1057 = vunpack.c.h.b16 %v192
    %v1058 = vunpack.c.l.b16 %v193
    %v1059 = vunpack.c.h.b16 %v193
    %v1060 = vunpack.c.l.b16 %v194
    %v1061 = vunpack.c.h.b16 %v194
    %v1062 = vunpack.c.l.b16 %v195
    %v1063 = vunpack.c.h.b16 %v195
    %v1064 = vunpack.c.l.b16 %v196
    %v1065 = vunpack.c.h.b16 %v196
    %v1066 = vunpack.c.l.b16 %v197
    %v1067 = vunpack.c.h.b16 %v197
    %v1068 = vunpack.c.l.b16 %v198
    %v1069 = vunpack.c.h.b16 %v198
    %v1070 = vunpack.c.l.b16 %v199
    %v1071 = vunpack.c.h.b16 %v199
    %v1072 = vunpack.c.l.b16 %v200
    %v1073 = vunpack.c.h.b16 %v200
    %v1074 = vunpack.c.l.b16 %v201
    %v1075 = vunpack.c.h.b16 %v201
    %v1076 = vunpack.c.l.b16 %v202
    %v1077 = vunpack.c.h.b16 %v202
    %v1078 = vunpack.c.l.b16 %v203
    %v1079 = vunpack.c.h.b16 %v203
    %v1080 = vunpack.c.l.b16 %v204
    %v1081 = vunpack.c.h.b16 %v204
    %v1082 = vunpack.c.l.b16 %v205
    %v1083 = vunpack.c.h.b16 %v205
    %v1084 = vunpack.c.l.b16 %v206
    %v1085 = vunpack.c.h.b16 %v206
    %v1086 = vunpack.c.l.b16 %v207
    %v1087 = vunpack.c.h.b16 %v207
    %v1088 = vunpack.c.l.b16 %v208
    %v1089 = vunpack.c.h.b16 %v208
    %v1090 = vunpack.c.l.b16 %v209
    %v1091 = vunpack.c.h.b16 %v209
    %v1092 = vunpack.c.l.b16 %v210
    %v1093 = vunpack.c.h.b16 %v210
    %v1094 = vunpack.c.l.b16 %v211
    %v1095 = vunpack.c.h.b16 %v211
    %v1096 = vunpack.c.l.b16 %v212
    %v1097 = vunpack.c.h.b16 %v212
    %v1098 = vunpack.c.l.b16 %v213
    %v1099 = vunpack.c.h.b16 %v213
    %v1100 = vunpack.c.l.b16 %v214
    %v1101 = vunpack.c.h.b16 %v214
    %v1102 = vunpack.c.l.b16 %v215
    %v1103 = vunpack.c.h.b16 %v215
    %v1104 = vunpack.c.l.b16 %v216
    %v1105 = vunpack.c.h.b16 %v216
    %v1106 = vunpack.c.l.b16 %v217
    %v1107 = vunpack.c.h.b16 %v217
    %v1108 = vunpack.c.l.b16 %v218
    %v1109 = vunpack.c.h.b16 %v218
    %v1110 = vunpack.c.l.b16 %v219
    %v1111 = vunpack.c.h.b16 %v219
    %v1112 = vunpack.c.l.b16 %v220
    %v1113 = vunpack.c.h.b16 %v220
    %v1114 = vunpack.c.l.b16 %v221
    %v1115 = vunpack.c.h.b16 %v221
    %v1116 = vunpack.c.l.b16 %v222
    %v1117 = vunpack.c.h.b16 %v222
    %v1118 = vunpack.c.l.b16 %v223
    %v1119 = vunpack.c.h.b16 %v223
    %v1120 = vunpack.c.l.b16 %v224
    %v1121 = vunpack.c.h.b16 %v224
    %v1122 = vunpack.c.l.b16 %v225
    %v1123 = vunpack.c.h.b16 %v225
    %v1124 = vunpack.c.l.b16 %v226
    %v1125 = vunpack.c.h.b16 %v226
    %v1126 = vunpack.c.l.b16 %v227
    %v1127 = vunpack.c.h.b16 %v227
    %v1128 = vunpack.c.l.b16 %v228
    %v1129 = vunpack.c.h.b16 %v228
    %v1130 = vunpack.c.l.b16 %v229
    %v1131 = vunpack.c.h.b16 %v229
    %v1132 = vunpack.c.l.b16 %v230
    %v1133 = vunpack.c.h.b16 %v230
    %v1134 = vunpack.c.l.b16 %v231
    %v1135 = vunpack.c.h.b16 %v231
    %v1136 = vunpack.c.l.b16 %v232
    %v1137 = vunpack.c.h.b16 %v232
    %v1138 = vunpack.c.l.b16 %v233
    %v1139 = vunpack.c.h.b16 %v233
    %v1140 = vunpack.c.l.b16 %v234
    %v1141 = vunpack.c.h.b16 %v234
    %v1142 = vunpack.c.l.b16 %v235
    %v1143 = vunpack.c.h.b16 %v235
    %v1144 = vunpack.c.l.b16 %v236
    %v1145 = vunpack.c.h.b16 %v236
    %v1146 = vunpack.c.l.b16 %v237
    %v1147 = vunpack.c.h.b16 %v237
    %v1148 = vunpack.c.l.b16 %v238
    %v1149 = vunpack.c.h.b16 %v238
    %v1150 = vunpack.c.l.b16 %v239
    %v1151 = vunpack.c.h.b16 %v239
    %v1152 = vunpack.c.l.b16 %v240
    %v1153 = vunpack.c.h.b16 %v240
    %v1154 = vunpack.c.l.b16 %v241
    %v1155 = vunpack.c.h.b16 %v241
    %v1156 = vunpack.c.l.b16 %v242
    %v1157 = vunpack.c.h.b16 %v242
    %v1158 = vunpack.c.l.b16 %v243
    %v1159 = vunpack.c.h.b16 %v243
    %v1160 = vunpack.c.l.b16 %v244
    %v1161 = vunpack.c.h.b16 %v244
    %v1162 = vunpack.c.l.b16 %v245
    %v1163 = vunpack.c.h.b16 %v245
    %v1164 = vunpack.c.l.b16 %v246
    %v1165 = vunpack.c.h.b16 %v246
    %v1166 = vunpack.c.l.b16 %v247
    %v1167 = vunpack.c.h.b16 %v247
    %v1168 = vunpack.c.l.b16 %v248
    %v1169 = vunpack.c.h.b16 %v248
    %v1170 = vunpack.c.l.b16 %v249
    %v1171 = vunpack.c.h.b16 %v249
    %v1172 = vunpack.c.l.b16 %v250
    %v1173 = vunpack.c.h.b16 %v250
    %v1174 = vunpack.c.l.b16 %v251
    %v1175 = vunpack.c.h.b16 %v251
    %v1176 = vunpack.c.l.b16 %v252
    %v1177 = vunpack.c.h.b16 %v252
    %v1178 = vunpack.c.l.b16 %v253
    %v1179 = vunpack.c.h.b16 %v253
    %v1180 = vunpack.c.l.b16 %v254
    %v1181 = vunpack.c.h.b16 %v254
    %v1182 = vunpack.c.l.b16 %v255
    %v1183 = vunpack.c.h.b16 %v255
    %v1184 = vunpack.c.l.b16 %v256
    %v1185 = vunpack.c.h.b16 %v256
    %v1186 = vunpack.c.l.b16 %v257
    %v1187 = vunpack.c.h.b16 %v257
    %v1188 = vunpack.c.l.b16 %v258
    %v1189 = vunpack.c.h.b16 %v258
    %v1190 = vunpack.c.l.b16 %v259
    %v1191 = vunpack.c.h.b16 %v259
    %v1192 = vunpack.c.l.b16 %v260
    %v1193 = vunpack.c.h.b16 %v260
    %v1194 = vunpack.c.l.b16 %v261
    %v1195 = vunpack.c.h.b16 %v261
    %v1196 = vunpack.c.l.b16 %v262
    %v1197 = vunpack.c.h.b16 %v262
    %v1198 = vunpack.c.l.b16 %v263
    %v1199 = vunpack.c.h.b16 %v263
    %v1200 = vunpack.c.l.b16 %v264
    %v1201 = vunpack.c.h.b16 %v264
    %v1202 = vunpack.c.l.b16 %v265
    %v1203 = vunpack.c.h.b16 %v265
    %v1204 = vunpack.c.l.b16 %v266
    %v1205 = vunpack.c.h.b16 %v266
    %v1206 = vunpack.c.l.b16 %v267
    %v1207 = vunpack.c.h.b16 %v267
    %v1208 = vunpack.c.l.b16 %v268
    %v1209 = vunpack.c.h.b16 %v268
    %v1210 = vunpack.c.l.b16 %v269
    %v1211 = vunpack.c.h.b16 %v269
    %v1212 = vunpack.c.l.b16 %v270
    %v1213 = vunpack.c.h.b16 %v270
    %v1214 = vunpack.c.l.b16 %v271
    %v1215 = vunpack.c.h.b16 %v271
    %v1216 = vunpack.c.l.b16 %v272
    %v1217 = vunpack.c.h.b16 %v272
    %v1218 = vunpack.c.l.b16 %v273
    %v1219 = vunpack.c.h.b16 %v273
    %v1220 = vunpack.c.l.b16 %v274
    %v1221 = vunpack.c.h.b16 %v274
    %v1222 = vunpack.c.l.b16 %v275
    %v1223 = vunpack.c.h.b16 %v275
    %v1224 = vunpack.c.l.b16 %v276
    %v1225 = vunpack.c.h.b16 %v276
    %v1226 = vunpack.c.l.b16 %v277
    %v1227 = vunpack.c.h.b16 %v277
    %v1228 = vunpack.c.l.b16 %v278
    %v1229 = vunpack.c.h.b16 %v278
    %v1230 = vunpack.c.l.b16 %v279
    %v1231 = vunpack.c.h.b16 %v279
    %v1232 = vunpack.c.l.b16 %v280
    %v1233 = vunpack.c.h.b16 %v280
    %v1234 = vunpack.c.l.b16 %v281
    %v1235 = vunpack.c.h.b16 %v281
    %v1236 = vunpack.c.l.b16 %v282
    %v1237 = vunpack.c.h.b16 %v282
    %v1238 = vunpack.c.l.b16 %v283
    %v1239 = vunpack.c.h.b16 %v283
    %v1240 = vunpack.c.l.b16 %v284
    %v1241 = vunpack.c.h.b16 %v284
    %v1242 = vunpack.c.l.b16 %v285
    %v1243 = vunpack.c.h.b16 %v285
    %v1244 = vunpack.c.l.b16 %v286
    %v1245 = vunpack.c.h.b16 %v286
    %v1246 = vunpack.c.l.b16 %v287
    %v1247 = vunpack.c.h.b16 %v287
    %v1248 = vunpack.c.l.b16 %v288
    %v1249 = vunpack.c.h.b16 %v288
    %v1250 = vunpack.c.l.b16 %v289
    %v1251 = vunpack.c.h.b16 %v289
    %v1252 = vunpack.c.l.b16 %v290
    %v1253 = vunpack.c.h.b16 %v290
    %v1254 = vunpack.c.l.b16 %v291
    %v1255 = vunpack.c.h.b16 %v291
    %v1256 = vunpack.c.l.b16 %v292
    %v1257 = vunpack.c.h.b16 %v292
    %v1258 = vunpack.c.l.b16 %v293
    %v1259 = vunpack.c.h.b16 %v293
    %v1260 = vunpack.c.l.b16 %v294
    %v1261 = vunpack.c.h.b16 %v294
    %v1262 = vunpack.c.l.b16 %v295
    %v1263 = vunpack.c.h.b16 %v295
    %v1264 = vunpack.c.l.b16 %v296
    %v1265 = vunpack.c.h.b16 %v296
    %v1266 = vunpack.c.l.b16 %v297
    %v1267 = vunpack.c.h.b16 %v297
    %v1268 = vunpack.c.l.b16 %v298
    %v1269 = vunpack.c.h.b16 %v298
    %v1270 = vunpack.c.l.b16 %v299
    %v1271 = vunpack.c.h.b16 %v299
    %v1272 = vunpack.c.l.b16 %v300
    %v1273 = vunpack.c.h.b16 %v300
    %v1274 = vunpack.c.l.b16 %v301
    %v1275 = vunpack.c.h.b16 %v301
    %v1276 = vunpack.c.l.b16 %v302
    %v1277 = vunpack.c.h.b16 %v302
    %v1278 = vunpack.c.l.b16 %v303
    %v1279 = vunpack.c.h.b16 %v303
    %v1280 = vunpack.c.l.b16 %v304
    %v1281 = vunpack.c.h.b16 %v304
    %v1282 = vunpack.c.l.b16 %v305
    %v1283 = vunpack.c.h.b16 %v305
    %v1284 = vpack.c.b16 %v840, %v836
    %v1285 = vpack.c.b16 %v841, %v837
    %v1286 = vpack.c.b16 %v842, %v838
    %v1287 = vpack.c.b16 %v843, %v839
    %v1288 = vpack.c.b16 %v848, %v844
    %v1289 = vpack.c.b16 %v849, %v845
    %v1290 = vpack.c.b16 %v850, %v846
    %v1291 = vpack.c.b16 %v851, %v847
    %v1292 = vpack.c.b16 %v856, %v852
    %v1293 = vpack.c.b16 %v857, %v853
    %v1294 = vpack.c.b16 %v858, %v854
    %v1295 = vpack.c.b16 %v859, %v855
    %v1296 = vpack.c.b16 %v864, %v860
    %v1297 = vpack.c.b16 %v865, %v861
    %v1298 = vpack.c.b16 %v866, %v862
    %v1299 = vpack.c.b16 %v867, %v863
    %v1300 = vpack.c.b16 %v872, %v868
    %v1301 = vpack.c.b16 %v873, %v869
    %v1302 = vpack.c.b16 %v874, %v870
    %v1303 = vpack.c.b16 %v875, %v871
    %v1304 = vpack.c.b16 %v880, %v876
    %v1305 = vpack.c.b16 %v881, %v877
    %v1306 = vpack.c.b16 %v882, %v878
    %v1307 = vpack.c.b16 %v883, %v879
    %v1308 = vpack.c.b16 %v888, %v884
    %v1309 = vpack.c.b16 %v889, %v885
    %v1310 = vpack.c.b16 %v890, %v886
    %v1311 = vpack.c.b16 %v891, %v887
    %v1312 = vpack.c.b16 %v896, %v892
    %v1313 = vpack.c.b16 %v897, %v893
    %v1314 = vpack.c.b16 %v898, %v894
    %v1315 = vpack.c.b16 %v899, %v895
    %v1316 = vpack.c.b16 %v904, %v900
    %v1317 = vpack.c.b16 %v905, %v901
    %v1318 = vpack.c.b16 %v906, %v902
    %v1319 = vpack.c.b16 %v907, %v903
    %v1320 = vpack.c.b16 %v912, %v908
    %v1321 = vpack.c.b16 %v913, %v909
    %v1322 = vpack.c.b16 %v914, %v910
    %v1323 = vpack.c.b16 %v915, %v911
    %v1324 = vpack.c.b16 %v920, %v916
    %v1325 = vpack.c.b16 %v921, %v917
    %v1326 = vpack.c.b16 %v922, %v918
    %v1327 = vpack.c.b16 %v923, %v919
    %v1328 = vpack.c.b16 %v928, %v924
    %v1329 = vpack.c.b16 %v929, %v925
    %v1330 = vpack.c.b16 %v930, %v926
    %v1331 = vpack.c.b16 %v931, %v927
    %v1332 = vpack.c.b16 %v936, %v932
    %v1333 = vpack.c.b16 %v937, %v933
    %v1334 = vpack.c.b16 %v938, %v934
    %v1335 = vpack.c.b16 %v939, %v935
    %v1336 = vpack.c.b16 %v944, %v940
    %v1337 = vpack.c.b16 %v945, %v941
    %v1338 = vpack.c.b16 %v946, %v942
    %v1339 = vpack.c.b16 %v947, %v943
    %v1340 = vpack.c.b16 %v952, %v948
    %v1341 = vpack.c.b16 %v953, %v949
    %v1342 = vpack.c.b16 %v954, %v950
    %v1343 = vpack.c.b16 %v955, %v951
    %v1344 = vpack.c.b16 %v960, %v956
    %v1345 = vpack.c.b16 %v961, %v957
    %v1346 = vpack.c.b16 %v962, %v958
    %v1347 = vpack.c.b16 %v963, %v959
    %v1348 = vpack.c.b16 %v968, %v964
    %v1349 = vpack.c.b16 %v969, %v965
    %v1350 = vpack.c.b16 %v970, %v966
    %v1351 = vpack.c.b16 %v971, %v967
    %v1352 = vpack.c.b16 %v976, %v972
    %v1353 = vpack.c.b16 %v977, %v973
    %v1354 = vpack.c.b16 %v978, %v974
    %v1355 = vpack.c.b16 %v979, %v975
    %v1356 = vpack.c.b16 %v984, %v980
    %v1357 = vpack.c.b16 %v985, %v981
    %v1358 = vpack.c.b16 %v986, %v982
    %v1359 = vpack.c.b16 %v987, %v983
    %v1360 = vpack.c.b16 %v992, %v988
    %v1361 = vpack.c.b16 %v993, %v989
    %v1362 = vpack.c.b16 %v994, %v990
    %v1363 = vpack.c.b16 %v995, %v991
    %v1364 = vpack.c.b16 %v1000, %v996
    %v1365 = vpack.c.b16 %v1001, %v997
    %v1366 = vpack.c.b16 %v1002, %v998
    %v1367 = vpack.c.b16 %v1003, %v999
    %v1368 = vpack.c.b16 %v1008, %v1004
    %v1369 = vpack.c.b16 %v1009, %v1005
    %v1370 = vpack.c.b16 %v1010, %v1006
    %v1371 = vpack.c.b16 %v1011, %v1007
    %v1372 = vpack.c.b16 %v1016, %v1012
    %v1373 = vpack.c.b16 %v1017, %v1013
    %v1374 = vpack.c.b16 %v1018, %v1014
    %v1375 = vpack.c.b16 %v1019, %v1015
    %v1376 = vpack.c.b16 %v1024, %v1020
    %v1377 = vpack.c.b16 %v1025, %v1021
    %v1378 = vpack.c.b16 %v1026, %v1022
    %v1379 = vpack.c.b16 %v1027, %v1023
    %v1380 = vpack.c.b16 %v1032, %v1028
    %v1381 = vpack.c.b16 %v1033, %v1029
    %v1382 = vpack.c.b16 %v1034, %v1030
    %v1383 = vpack.c.b16 %v1035, %v1031
    %v1384 = vpack.c.b16 %v1040, %v1036
    %v1385 = vpack.c.b16 %v1041, %v1037
    %v1386 = vpack.c.b16 %v1042, %v1038
    %v1387 = vpack.c.b16 %v1043, %v1039
    %v1388 = vpack.c.b16 %v1048, %v1044
    %v1389 = vpack.c.b16 %v1049, %v1045
    %v1390 = vpack.c.b16 %v1050, %v1046
    %v1391 = vpack.c.b16 %v1051, %v1047
    %v1392 = vpack.c.b16 %v1056, %v1052
    %v1393 = vpack.c.b16 %v1057, %v1053
    %v1394 = vpack.c.b16 %v1058, %v1054
    %v1395 = vpack.c.b16 %v1059, %v1055
    %v1396 = vpack.c.b16 %v1064, %v1060
    %v1397 = vpack.c.b16 %v1065, %v1061
    %v1398 = vpack.c.b16 %v1066, %v1062
    %v1399 = vpack.c.b16 %v1067, %v1063
    %v1400 = vpack.c.b16 %v1072, %v1068
    %v1401 = vpack.c.b16 %v1073, %v1069
    %v1402 = vpack.c.b16 %v1074, %v1070
    %v1403 = vpack.c.b16 %v1075, %v1071
    %v1404 = vpack.c.b16 %v1080, %v1076
    %v1405 = vpack.c.b16 %v1081, %v1077
    %v1406 = vpack.c.b16 %v1082, %v1078
    %v1407 = vpack.c.b16 %v1083, %v1079
    %v1408 = vpack.c.b16 %v1088, %v1084
    %v1409 = vpack.c.b16 %v1089, %v1085
    %v1410 = vpack.c.b16 %v1090, %v1086
    %v1411 = vpack.c.b16 %v1091, %v1087
    %v1412 = vpack.c.b16 %v1096, %v1092
    %v1413 = vpack.c.b16 %v1097, %v1093
    %v1414 = vpack.c.b16 %v1098, %v1094
    %v1415 = vpack.c.b16 %v1099, %v1095
    %v1416 = vpack.c.b16 %v1104, %v1100
    %v1417 = vpack.c.b16 %v1105, %v1101
    %v1418 = vpack.c.b16 %v1106, %v1102
    %v1419 = vpack.c.b16 %v1107, %v1103
    %v1420 = vpack.c.b16 %v1112, %v1108
    %v1421 = vpack.c.b16 %v1113, %v1109
    %v1422 = vpack.c.b16 %v1114, %v1110
    %v1423 = vpack.c.b16 %v1115, %v1111
    %v1424 = vpack.c.b16 %v1120, %v1116
    %v1425 = vpack.c.b16 %v1121, %v1117
    %v1426 = vpack.c.b16 %v1122, %v1118
    %v1427 = vpack.c.b16 %v1123, %v1119
    %v1428 = vpack.c.b16 %v1128, %v1124
    %v1429 = vpack.c.b16 %v1129, %v1125
    %v1430 = vpack.c.b16 %v1130, %v1126
    %v1431 = vpack.c.b16 %v1131, %v1127
    %v1432 = vpack.c.b16 %v1136, %v1132
    %v1433 = vpack.c.b16 %v1137, %v1133
    %v1434 = vpack.c.b16 %v1138, %v1134
    %v1435 = vpack.c.b16 %v1139, %v1135
    %v1436 = vpack.c.b16 %v1144, %v1140
    %v1437 = vpack.c.b16 %v1145, %v1141
    %v1438 = vpack.c.b16 %v1146, %v1142
    %v1439 = vpack.c.b16 %v1147, %v1143
    %v1440 = vpack.c.b16 %v1152, %v1148
    %v1441 = vpack.c.b16 %v1153, %v1149
    %v1442 = vpack.c.b16 %v1154, %v1150
    %v1443 = vpack.c.b16 %v1155, %v1151
    %v1444 = vpack.c.b16 %v1160, %v1156
    %v1445 = vpack.c.b16 %v1161, %v1157
    %v1446 = vpack.c.b16 %v1162, %v1158
    %v1447 = vpack.c.b16 %v1163, %v1159
    %v1448 = vpack.c.b16 %v1168, %v1164
    %v1449 = vpack.c.b16 %v1169, %v1165
    %v1450 = vpack.c.b16 %v1170, %v1166
    %v1451 = vpack.c.b16 %v1171, %v1167
    %v1452 = vpack.c.b16 %v1176, %v1172
    %v1453 = vpack.c.b16 %v1177, %v1173
    %v1454 = vpack.c.b16 %v1178, %v1174
    %v1455 = vpack.c.b16 %v1179, %v1175
    %v1456 = vpack.c.b16 %v1184, %v1180
    %v1457 = vpack.c.b16 %v1185, %v1181
    %v1458 = vpack.c.b16 %v1186, %v1182
    %v1459 = vpack.c.b16 %v1187, %v1183
    %v1460 = vpack.c.b16 %v1192, %v1188
    %v1461 = vpack.c.b16 %v1193, %v1189
    %v1462 = vpack.c.b16 %v1194, %v1190
    %v1463 = vpack.c.b16 %v1195, %v1191
    %v1464 = vpack.c.b16 %v1200, %v1196
    %v1465 = vpack.c.b16 %v1201, %v1197
    %v1466 = vpack.c.b16 %v1202, %v1198
    %v1467 = vpack.c.b16 %v1203, %v1199
    %v1468 = vpack.c.b16 %v1208, %v1204
    %v1469 = vpack.c.b16 %v1209, %v1205
    %v1470 = vpack.c.b16 %v1210, %v1206
    %v1471 = vpack.c.b16 %v1211, %v1207
    %v1472 = vpack.c.b16 %v1216, %v1212
    %v1473 = vpack.c.b16 %v1217, %v1213
    %v1474 = vpack.c.b16 %v1218, %v1214
    %v1475 = vpack.c.b16 %v1219, %v1215
    %v1476 = vpack.c.b16 %v1224, %v1220
    %v1477 = vpack.c.b16 %v1225, %v1221
    %v1478 = vpack.c.b16 %v1226, %v1222
    %v1479 = vpack.c.b16 %v1227, %v1223
    %v1480 = vpack.c.b16 %v1232, %v1228
    %v1481 = vpack.c.b16 %v1233, %v1229
    %v1482 = vpack.c.b16 %v1234, %v1230
    %v1483 = vpack.c.b16 %v1235, %v1231
    %v1484 = vpack.c.b16 %v1240, %v1236
    %v1485 = vpack.c.b16 %v1241, %v1237
    %v1486 = vpack.c.b16 %v1242, %v1238
    %v1487 = vpack.c.b16 %v1243, %v1239
    %v1488 = vpack.c.b16 %v1248, %v1244
    %v1489 = vpack.c.b16 %v1249, %v1245
    %v1490 = vpack.c.b16 %v1250, %v1246
    %v1491 = vpack.c.b16 %v1251, %v1247
    %v1492 = vpack.c.b16 %v1256, %v1252
    %v1493 = vpack.c.b16 %v1257, %v1253
    %v1494 = vpack.c.b16 %v1258, %v1254
    %v1495 = vpack.c.b16 %v1259, %v1255
    %v1496 = vpack.c.b16 %v1264, %v1260
    %v1497 = vpack.c.b16 %v1265, %v1261
    %v1498 = vpack.c.b16 %v1266, %v1262
    %v1499 = vpack.c.b16 %v1267, %v1263
    %v1500 = vpack.c.b16 %v1272, %v1268
    %v1501 = vpack.c.b16 %v1273, %v1269
    %v1502 = vpack.c.b16 %v1274, %v1270
    %v1503 = vpack.c.b16 %v1275, %v1271
    %v1504 = vpack.c.b16 %v1280, %v1276
    %v1505 = vpack.c.b16 %v1281, %v1277
    %v1506 = vpack.c.b16 %v1282, %v1278
    %v1507 = vpack.c.b16 %v1283, %v1279
    %1732 = vmatpush.bf16.msra.mxu0 %v1312
    %1733 = vmatpush.bf16.msra.mxu0 %v1308
    %1734 = vmatpush.bf16.msra.mxu0 %v1304
    %1735 = vmatpush.bf16.msra.mxu0 %v1300
    %1736 = vmatpush.bf16.msra.mxu0 %v1296
    %1737 = vmatpush.bf16.msra.mxu0 %v1292
    %1738 = vmatpush.bf16.msra.mxu0 %v1288
    %1739 = vmatpush.bf16.msra.mxu0 %v1284
    %1740 = vmatmul.bf16.gmra.mxu0 %v596
    %v1741 = vpop.f32.mrf.mxu0
    %v1742 = vadd.f32 %v604, %v1741
    %v1743 = vpop.f32.mrf.mxu0
    %1744 = vdwg.mxu0
    %1745 = vmatpush.bf16.msra.mxu0 %v1344
    %1746 = vmatpush.bf16.msra.mxu0 %v1340
    %1747 = vmatpush.bf16.msra.mxu0 %v1336
    %1748 = vmatpush.bf16.msra.mxu0 %v1332
    %1749 = vmatpush.bf16.msra.mxu0 %v1328
    %1750 = vmatpush.bf16.msra.mxu0 %v1324
    %1751 = vmatpush.bf16.msra.mxu0 %v1320
    %1752 = vmatpush.bf16.msra.mxu0 %v1316
    %1753 = vmatmul.bf16.gmra.mxu0 %v597
    %v1754 = vpop.f32.mrf.mxu0
    %v1755 = vadd.f32 %v1742, %v1754
    %v1756 = vpop.f32.mrf.mxu0
    %1757 = vdwg.mxu0
    %1758 = vmatpush.bf16.msra.mxu0 %v1376
    %1759 = vmatpush.bf16.msra.mxu0 %v1372
    %1760 = vmatpush.bf16.msra.mxu0 %v1368
    %1761 = vmatpush.bf16.msra.mxu0 %v1364
    %1762 = vmatpush.bf16.msra.mxu0 %v1360
    %1763 = vmatpush.bf16.msra.mxu0 %v1356
    %1764 = vmatpush.bf16.msra.mxu0 %v1352
    %1765 = vmatpush.bf16.msra.mxu0 %v1348
    %1766 = vmatmul.bf16.gmra.mxu0 %v598
    %v1767 = vpop.f32.mrf.mxu0
    %v1768 = vadd.f32 %v1755, %v1767
    %v1769 = vpop.f32.mrf.mxu0
    %1770 = vdwg.mxu0
    %1771 = vmatpush.bf16.msra.mxu0 %v1408
    %1772 = vmatpush.bf16.msra.mxu0 %v1404
    %1773 = vmatpush.bf16.msra.mxu0 %v1400
    %1774 = vmatpush.bf16.msra.mxu0 %v1396
    %1775 = vmatpush.bf16.msra.mxu0 %v1392
    %1776 = vmatpush.bf16.msra.mxu0 %v1388
    %1777 = vmatpush.bf16.msra.mxu0 %v1384
    %1778 = vmatpush.bf16.msra.mxu0 %v1380
    %1779 = vmatmul.bf16.gmra.mxu0 %v599
    %v1780 = vpop.f32.mrf.mxu0
    %v1781 = vadd.f32 %v1768, %v1780
    %v1782 = vpop.f32.mrf.mxu0
    %1783 = vdwg.mxu0
    %1784 = vmatpush.bf16.msra.mxu0 %v1440
    %1785 = vmatpush.bf16.msra.mxu0 %v1436
    %1786 = vmatpush.bf16.msra.mxu0 %v1432
    %1787 = vmatpush.bf16.msra.mxu0 %v1428
    %1788 = vmatpush.bf16.msra.mxu0 %v1424
    %1789 = vmatpush.bf16.msra.mxu0 %v1420
    %1790 = vmatpush.bf16.msra.mxu0 %v1416
    %1791 = vmatpush.bf16.msra.mxu0 %v1412
    %1792 = vmatmul.bf16.gmra.mxu0 %v600
    %v1793 = vpop.f32.mrf.mxu0
    %v1794 = vadd.f32 %v1781, %v1793
    %v1795 = vpop.f32.mrf.mxu0
    %1796 = vdwg.mxu0
    %1797 = vmatpush.bf16.msra.mxu0 %v1472
    %1798 = vmatpush.bf16.msra.mxu0 %v1468
    %1799 = vmatpush.bf16.msra.mxu0 %v1464
    %1800 = vmatpush.bf16.msra.mxu0 %v1460
    %1801 = vmatpush.bf16.msra.mxu0 %v1456
    %1802 = vmatpush.bf16.msra.mxu0 %v1452
    %1803 = vmatpush.bf16.msra.mxu0 %v1448
    %1804 = vmatpush.bf16.msra.mxu0 %v1444
    %1805 = vmatmul.bf16.gmra.mxu0 %v601
    %v1806 = vpop.f32.mrf.mxu0
    %v1807 = vadd.f32 %v1794, %v1806
    %v1808 = vpop.f32.mrf.mxu0
    %1809 = vdwg.mxu0
    %1810 = vmatpush.bf16.msra.mxu0 %v1504
    %1811 = vmatpush.bf16.msra.mxu0 %v1500
    %1812 = vmatpush.bf16.msra.mxu0 %v1496
    %1813 = vmatpush.bf16.msra.mxu0 %v1492
    %1814 = vmatpush.bf16.msra.mxu0 %v1488
    %1815 = vmatpush.bf16.msra.mxu0 %v1484
    %1816 = vmatpush.bf16.msra.mxu0 %v1480
    %1817 = vmatpush.bf16.msra.mxu0 %v1476
    %1818 = vmatmul.bf16.gmra.mxu0 %v602
    %v1819 = vpop.f32.mrf.mxu0
    %v1820 = vadd.f32 %v1807, %v1819
    %v1821 = vpop.f32.mrf.mxu0
    %1822 = vdwg.mxu0
    %1823 = vmatpush.bf16.msra.mxu0 %v1313
    %1824 = vmatpush.bf16.msra.mxu0 %v1309
    %1825 = vmatpush.bf16.msra.mxu0 %v1305
    %1826 = vmatpush.bf16.msra.mxu0 %v1301
    %1827 = vmatpush.bf16.msra.mxu0 %v1297
    %1828 = vmatpush.bf16.msra.mxu0 %v1293
    %1829 = vmatpush.bf16.msra.mxu0 %v1289
    %1830 = vmatpush.bf16.msra.mxu0 %v1285
    %1831 = vmatmul.bf16.gmra.mxu0 %v596
    %v1832 = vpop.f32.mrf.mxu0
    %v1833 = vadd.f32 %v605, %v1832
    %v1834 = vpop.f32.mrf.mxu0
    %1835 = vdwg.mxu0
    %1836 = vmatpush.bf16.msra.mxu0 %v1345
    %1837 = vmatpush.bf16.msra.mxu0 %v1341
    %1838 = vmatpush.bf16.msra.mxu0 %v1337
    %1839 = vmatpush.bf16.msra.mxu0 %v1333
    %1840 = vmatpush.bf16.msra.mxu0 %v1329
    %1841 = vmatpush.bf16.msra.mxu0 %v1325
    %1842 = vmatpush.bf16.msra.mxu0 %v1321
    %1843 = vmatpush.bf16.msra.mxu0 %v1317
    %1844 = vmatmul.bf16.gmra.mxu0 %v597
    %v1845 = vpop.f32.mrf.mxu0
    %v1846 = vadd.f32 %v1833, %v1845
    %v1847 = vpop.f32.mrf.mxu0
    %1848 = vdwg.mxu0
    %1849 = vmatpush.bf16.msra.mxu0 %v1377
    %1850 = vmatpush.bf16.msra.mxu0 %v1373
    %1851 = vmatpush.bf16.msra.mxu0 %v1369
    %1852 = vmatpush.bf16.msra.mxu0 %v1365
    %1853 = vmatpush.bf16.msra.mxu0 %v1361
    %1854 = vmatpush.bf16.msra.mxu0 %v1357
    %1855 = vmatpush.bf16.msra.mxu0 %v1353
    %1856 = vmatpush.bf16.msra.mxu0 %v1349
    %1857 = vmatmul.bf16.gmra.mxu0 %v598
    %v1858 = vpop.f32.mrf.mxu0
    %v1859 = vadd.f32 %v1846, %v1858
    %v1860 = vpop.f32.mrf.mxu0
    %1861 = vdwg.mxu0
    %1862 = vmatpush.bf16.msra.mxu0 %v1409
    %1863 = vmatpush.bf16.msra.mxu0 %v1405
    %1864 = vmatpush.bf16.msra.mxu0 %v1401
    %1865 = vmatpush.bf16.msra.mxu0 %v1397
    %1866 = vmatpush.bf16.msra.mxu0 %v1393
    %1867 = vmatpush.bf16.msra.mxu0 %v1389
    %1868 = vmatpush.bf16.msra.mxu0 %v1385
    %1869 = vmatpush.bf16.msra.mxu0 %v1381
    %1870 = vmatmul.bf16.gmra.mxu0 %v599
    %v1871 = vpop.f32.mrf.mxu0
    %v1872 = vadd.f32 %v1859, %v1871
    %v1873 = vpop.f32.mrf.mxu0
    %1874 = vdwg.mxu0
    %1875 = vmatpush.bf16.msra.mxu0 %v1441
    %1876 = vmatpush.bf16.msra.mxu0 %v1437
    %1877 = vmatpush.bf16.msra.mxu0 %v1433
    %1878 = vmatpush.bf16.msra.mxu0 %v1429
    %1879 = vmatpush.bf16.msra.mxu0 %v1425
    %1880 = vmatpush.bf16.msra.mxu0 %v1421
    %1881 = vmatpush.bf16.msra.mxu0 %v1417
    %1882 = vmatpush.bf16.msra.mxu0 %v1413
    %1883 = vmatmul.bf16.gmra.mxu0 %v600
    %v1884 = vpop.f32.mrf.mxu0
    %v1885 = vadd.f32 %v1872, %v1884
    %v1886 = vpop.f32.mrf.mxu0
    %1887 = vdwg.mxu0
    %1888 = vmatpush.bf16.msra.mxu0 %v1473
    %1889 = vmatpush.bf16.msra.mxu0 %v1469
    %1890 = vmatpush.bf16.msra.mxu0 %v1465
    %1891 = vmatpush.bf16.msra.mxu0 %v1461
    %1892 = vmatpush.bf16.msra.mxu0 %v1457
    %1893 = vmatpush.bf16.msra.mxu0 %v1453
    %1894 = vmatpush.bf16.msra.mxu0 %v1449
    %1895 = vmatpush.bf16.msra.mxu0 %v1445
    %1896 = vmatmul.bf16.gmra.mxu0 %v601
    %v1897 = vpop.f32.mrf.mxu0
    %v1898 = vadd.f32 %v1885, %v1897
    %v1899 = vpop.f32.mrf.mxu0
    %1900 = vdwg.mxu0
    %1901 = vmatpush.bf16.msra.mxu0 %v1505
    %1902 = vmatpush.bf16.msra.mxu0 %v1501
    %1903 = vmatpush.bf16.msra.mxu0 %v1497
    %1904 = vmatpush.bf16.msra.mxu0 %v1493
    %1905 = vmatpush.bf16.msra.mxu0 %v1489
    %1906 = vmatpush.bf16.msra.mxu0 %v1485
    %1907 = vmatpush.bf16.msra.mxu0 %v1481
    %1908 = vmatpush.bf16.msra.mxu0 %v1477
    %1909 = vmatmul.bf16.gmra.mxu0 %v602
    %v1910 = vpop.f32.mrf.mxu0
    %v1911 = vadd.f32 %v1898, %v1910
    %v1912 = vpop.f32.mrf.mxu0
    %1913 = vdwg.mxu0
    %1914 = vmatpush.bf16.msra.mxu0 %v1314
    %1915 = vmatpush.bf16.msra.mxu0 %v1310
    %1916 = vmatpush.bf16.msra.mxu0 %v1306
    %1917 = vmatpush.bf16.msra.mxu0 %v1302
    %1918 = vmatpush.bf16.msra.mxu0 %v1298
    %1919 = vmatpush.bf16.msra.mxu0 %v1294
    %1920 = vmatpush.bf16.msra.mxu0 %v1290
    %1921 = vmatpush.bf16.msra.mxu0 %v1286
    %1922 = vmatmul.bf16.gmra.mxu0 %v596
    %v1923 = vpop.f32.mrf.mxu0
    %v1924 = vadd.f32 %v606, %v1923
    %v1925 = vpop.f32.mrf.mxu0
    %1926 = vdwg.mxu0
    %1927 = vmatpush.bf16.msra.mxu0 %v1346
    %1928 = vmatpush.bf16.msra.mxu0 %v1342
    %1929 = vmatpush.bf16.msra.mxu0 %v1338
    %1930 = vmatpush.bf16.msra.mxu0 %v1334
    %1931 = vmatpush.bf16.msra.mxu0 %v1330
    %1932 = vmatpush.bf16.msra.mxu0 %v1326
    %1933 = vmatpush.bf16.msra.mxu0 %v1322
    %1934 = vmatpush.bf16.msra.mxu0 %v1318
    %1935 = vmatmul.bf16.gmra.mxu0 %v597
    %v1936 = vpop.f32.mrf.mxu0
    %v1937 = vadd.f32 %v1924, %v1936
    %v1938 = vpop.f32.mrf.mxu0
    %1939 = vdwg.mxu0
    %1940 = vmatpush.bf16.msra.mxu0 %v1378
    %1941 = vmatpush.bf16.msra.mxu0 %v1374
    %1942 = vmatpush.bf16.msra.mxu0 %v1370
    %1943 = vmatpush.bf16.msra.mxu0 %v1366
    %1944 = vmatpush.bf16.msra.mxu0 %v1362
    %1945 = vmatpush.bf16.msra.mxu0 %v1358
    %1946 = vmatpush.bf16.msra.mxu0 %v1354
    %1947 = vmatpush.bf16.msra.mxu0 %v1350
    %1948 = vmatmul.bf16.gmra.mxu0 %v598
    %v1949 = vpop.f32.mrf.mxu0
    %v1950 = vadd.f32 %v1937, %v1949
    %v1951 = vpop.f32.mrf.mxu0
    %1952 = vdwg.mxu0
    %1953 = vmatpush.bf16.msra.mxu0 %v1410
    %1954 = vmatpush.bf16.msra.mxu0 %v1406
    %1955 = vmatpush.bf16.msra.mxu0 %v1402
    %1956 = vmatpush.bf16.msra.mxu0 %v1398
    %1957 = vmatpush.bf16.msra.mxu0 %v1394
    %1958 = vmatpush.bf16.msra.mxu0 %v1390
    %1959 = vmatpush.bf16.msra.mxu0 %v1386
    %1960 = vmatpush.bf16.msra.mxu0 %v1382
    %1961 = vmatmul.bf16.gmra.mxu0 %v599
    %v1962 = vpop.f32.mrf.mxu0
    %v1963 = vadd.f32 %v1950, %v1962
    %v1964 = vpop.f32.mrf.mxu0
    %1965 = vdwg.mxu0
    %1966 = vmatpush.bf16.msra.mxu0 %v1442
    %1967 = vmatpush.bf16.msra.mxu0 %v1438
    %1968 = vmatpush.bf16.msra.mxu0 %v1434
    %1969 = vmatpush.bf16.msra.mxu0 %v1430
    %1970 = vmatpush.bf16.msra.mxu0 %v1426
    %1971 = vmatpush.bf16.msra.mxu0 %v1422
    %1972 = vmatpush.bf16.msra.mxu0 %v1418
    %1973 = vmatpush.bf16.msra.mxu0 %v1414
    %1974 = vmatmul.bf16.gmra.mxu0 %v600
    %v1975 = vpop.f32.mrf.mxu0
    %v1976 = vadd.f32 %v1963, %v1975
    %v1977 = vpop.f32.mrf.mxu0
    %1978 = vdwg.mxu0
    %1979 = vmatpush.bf16.msra.mxu0 %v1474
    %1980 = vmatpush.bf16.msra.mxu0 %v1470
    %1981 = vmatpush.bf16.msra.mxu0 %v1466
    %1982 = vmatpush.bf16.msra.mxu0 %v1462
    %1983 = vmatpush.bf16.msra.mxu0 %v1458
    %1984 = vmatpush.bf16.msra.mxu0 %v1454
    %1985 = vmatpush.bf16.msra.mxu0 %v1450
    %1986 = vmatpush.bf16.msra.mxu0 %v1446
    %1987 = vmatmul.bf16.gmra.mxu0 %v601
    %v1988 = vpop.f32.mrf.mxu0
    %v1989 = vadd.f32 %v1976, %v1988
    %v1990 = vpop.f32.mrf.mxu0
    %1991 = vdwg.mxu0
    %1992 = vmatpush.bf16.msra.mxu0 %v1506
    %1993 = vmatpush.bf16.msra.mxu0 %v1502
    %1994 = vmatpush.bf16.msra.mxu0 %v1498
    %1995 = vmatpush.bf16.msra.mxu0 %v1494
    %1996 = vmatpush.bf16.msra.mxu0 %v1490
    %1997 = vmatpush.bf16.msra.mxu0 %v1486
    %1998 = vmatpush.bf16.msra.mxu0 %v1482
    %1999 = vmatpush.bf16.msra.mxu0 %v1478
    %2000 = vmatmul.bf16.gmra.mxu0 %v602
    %v2001 = vpop.f32.mrf.mxu0
    %v2002 = vadd.f32 %v1989, %v2001
    %v2003 = vpop.f32.mrf.mxu0
    %2004 = vdwg.mxu0
    %2005 = vmatpush.bf16.msra.mxu0 %v1315
    %2006 = vmatpush.bf16.msra.mxu0 %v1311
    %2007 = vmatpush.bf16.msra.mxu0 %v1307
    %2008 = vmatpush.bf16.msra.mxu0 %v1303
    %2009 = vmatpush.bf16.msra.mxu0 %v1299
    %2010 = vmatpush.bf16.msra.mxu0 %v1295
    %2011 = vmatpush.bf16.msra.mxu0 %v1291
    %2012 = vmatpush.bf16.msra.mxu0 %v1287
    %2013 = vmatmul.bf16.gmra.mxu0 %v596
    %v2014 = vpop.f32.mrf.mxu0
    %v2015 = vadd.f32 %v607, %v2014
    %v2016 = vpop.f32.mrf.mxu0
    %2017 = vdwg.mxu0
    %2018 = vmatpush.bf16.msra.mxu0 %v1347
    %2019 = vmatpush.bf16.msra.mxu0 %v1343
    %2020 = vmatpush.bf16.msra.mxu0 %v1339
    %2021 = vmatpush.bf16.msra.mxu0 %v1335
    %2022 = vmatpush.bf16.msra.mxu0 %v1331
    %2023 = vmatpush.bf16.msra.mxu0 %v1327
    %2024 = vmatpush.bf16.msra.mxu0 %v1323
    %2025 = vmatpush.bf16.msra.mxu0 %v1319
    %2026 = vmatmul.bf16.gmra.mxu0 %v597
    %v2027 = vpop.f32.mrf.mxu0
    %v2028 = vadd.f32 %v2015, %v2027
    %v2029 = vpop.f32.mrf.mxu0
    %2030 = vdwg.mxu0
    %2031 = vmatpush.bf16.msra.mxu0 %v1379
    %2032 = vmatpush.bf16.msra.mxu0 %v1375
    %2033 = vmatpush.bf16.msra.mxu0 %v1371
    %2034 = vmatpush.bf16.msra.mxu0 %v1367
    %2035 = vmatpush.bf16.msra.mxu0 %v1363
    %2036 = vmatpush.bf16.msra.mxu0 %v1359
    %2037 = vmatpush.bf16.msra.mxu0 %v1355
    %2038 = vmatpush.bf16.msra.mxu0 %v1351
    %2039 = vmatmul.bf16.gmra.mxu0 %v598
    %v2040 = vpop.f32.mrf.mxu0
    %v2041 = vadd.f32 %v2028, %v2040
    %v2042 = vpop.f32.mrf.mxu0
    %2043 = vdwg.mxu0
    %2044 = vmatpush.bf16.msra.mxu0 %v1411
    %2045 = vmatpush.bf16.msra.mxu0 %v1407
    %2046 = vmatpush.bf16.msra.mxu0 %v1403
    %2047 = vmatpush.bf16.msra.mxu0 %v1399
    %2048 = vmatpush.bf16.msra.mxu0 %v1395
    %2049 = vmatpush.bf16.msra.mxu0 %v1391
    %2050 = vmatpush.bf16.msra.mxu0 %v1387
    %2051 = vmatpush.bf16.msra.mxu0 %v1383
    %2052 = vmatmul.bf16.gmra.mxu0 %v599
    %v2053 = vpop.f32.mrf.mxu0
    %v2054 = vadd.f32 %v2041, %v2053
    %v2055 = vpop.f32.mrf.mxu0
    %2056 = vdwg.mxu0
    %2057 = vmatpush.bf16.msra.mxu0 %v1443
    %2058 = vmatpush.bf16.msra.mxu0 %v1439
    %2059 = vmatpush.bf16.msra.mxu0 %v1435
    %2060 = vmatpush.bf16.msra.mxu0 %v1431
    %2061 = vmatpush.bf16.msra.mxu0 %v1427
    %2062 = vmatpush.bf16.msra.mxu0 %v1423
    %2063 = vmatpush.bf16.msra.mxu0 %v1419
    %2064 = vmatpush.bf16.msra.mxu0 %v1415
    %2065 = vmatmul.bf16.gmra.mxu0 %v600
    %v2066 = vpop.f32.mrf.mxu0
    %v2067 = vadd.f32 %v2054, %v2066
    %v2068 = vpop.f32.mrf.mxu0
    %2069 = vdwg.mxu0
    %2070 = vmatpush.bf16.msra.mxu0 %v1475
    %2071 = vmatpush.bf16.msra.mxu0 %v1471
    %2072 = vmatpush.bf16.msra.mxu0 %v1467
    %2073 = vmatpush.bf16.msra.mxu0 %v1463
    %2074 = vmatpush.bf16.msra.mxu0 %v1459
    %2075 = vmatpush.bf16.msra.mxu0 %v1455
    %2076 = vmatpush.bf16.msra.mxu0 %v1451
    %2077 = vmatpush.bf16.msra.mxu0 %v1447
    %2078 = vmatmul.bf16.gmra.mxu0 %v601
    %v2079 = vpop.f32.mrf.mxu0
    %v2080 = vadd.f32 %v2067, %v2079
    %v2081 = vpop.f32.mrf.mxu0
    %2082 = vdwg.mxu0
    %2083 = vmatpush.bf16.msra.mxu0 %v1507
    %2084 = vmatpush.bf16.msra.mxu0 %v1503
    %2085 = vmatpush.bf16.msra.mxu0 %v1499
    %2086 = vmatpush.bf16.msra.mxu0 %v1495
    %2087 = vmatpush.bf16.msra.mxu0 %v1491
    %2088 = vmatpush.bf16.msra.mxu0 %v1487
    %2089 = vmatpush.bf16.msra.mxu0 %v1483
    %2090 = vmatpush.bf16.msra.mxu0 %v1479
    %2091 = vmatmul.bf16.gmra.mxu0 %v602
    %v2092 = vpop.f32.mrf.mxu0
    %v2093 = vadd.f32 %v2080, %v2092
    %v2094 = vpop.f32.mrf.mxu0
    %2095 = vdwg.mxu0
    %v2096 = vmax.f32 %v1820, 0.0
    %v2097 = vmax.f32 %v1911, 0.0
    %v2098 = vmax.f32 %v2002, 0.0
    %v2099 = vmax.f32 %v2093, 0.0
    %v2100 = vpack.c.bf16 %v2096, %v2096
    %v2101 = vpack.c.bf16 %v2097, %v2097
    %v2102 = vpack.c.bf16 %v2098, %v2098
    %v2103 = vpack.c.bf16 %v2099, %v2099
    %v2105 = vperm.slane %v371, 0
    %v2106 = vperm.slane %v371, 1
    %v2173 = vunpack.c.l.b16 %v307
    %v2174 = vunpack.c.h.b16 %v307
    %v2175 = vunpack.c.l.b16 %v308
    %v2176 = vunpack.c.h.b16 %v308
    %v2177 = vunpack.c.l.b16 %v309
    %v2178 = vunpack.c.h.b16 %v309
    %v2179 = vunpack.c.l.b16 %v310
    %v2180 = vunpack.c.h.b16 %v310
    %v2181 = vunpack.c.l.b16 %v311
    %v2182 = vunpack.c.h.b16 %v311
    %v2183 = vunpack.c.l.b16 %v312
    %v2184 = vunpack.c.h.b16 %v312
    %v2185 = vunpack.c.l.b16 %v313
    %v2186 = vunpack.c.h.b16 %v313
    %v2187 = vunpack.c.l.b16 %v314
    %v2188 = vunpack.c.h.b16 %v314
    %v2189 = vunpack.c.l.b16 %v315
    %v2190 = vunpack.c.h.b16 %v315
    %v2191 = vunpack.c.l.b16 %v316
    %v2192 = vunpack.c.h.b16 %v316
    %v2193 = vunpack.c.l.b16 %v317
    %v2194 = vunpack.c.h.b16 %v317
    %v2195 = vunpack.c.l.b16 %v318
    %v2196 = vunpack.c.h.b16 %v318
    %v2197 = vunpack.c.l.b16 %v319
    %v2198 = vunpack.c.h.b16 %v319
    %v2199 = vunpack.c.l.b16 %v320
    %v2200 = vunpack.c.h.b16 %v320
    %v2201 = vunpack.c.l.b16 %v321
    %v2202 = vunpack.c.h.b16 %v321
    %v2203 = vunpack.c.l.b16 %v322
    %v2204 = vunpack.c.h.b16 %v322
    %v2205 = vunpack.c.l.b16 %v323
    %v2206 = vunpack.c.h.b16 %v323
    %v2207 = vunpack.c.l.b16 %v324
    %v2208 = vunpack.c.h.b16 %v324
    %v2209 = vunpack.c.l.b16 %v325
    %v2210 = vunpack.c.h.b16 %v325
    %v2211 = vunpack.c.l.b16 %v326
    %v2212 = vunpack.c.h.b16 %v326
    %v2213 = vunpack.c.l.b16 %v327
    %v2214 = vunpack.c.h.b16 %v327
    %v2215 = vunpack.c.l.b16 %v328
    %v2216 = vunpack.c.h.b16 %v328
    %v2217 = vunpack.c.l.b16 %v329
    %v2218 = vunpack.c.h.b16 %v329
    %v2219 = vunpack.c.l.b16 %v330
    %v2220 = vunpack.c.h.b16 %v330
    %v2221 = vunpack.c.l.b16 %v331
    %v2222 = vunpack.c.h.b16 %v331
    %v2223 = vunpack.c.l.b16 %v332
    %v2224 = vunpack.c.h.b16 %v332
    %v2225 = vunpack.c.l.b16 %v333
    %v2226 = vunpack.c.h.b16 %v333
    %v2227 = vunpack.c.l.b16 %v334
    %v2228 = vunpack.c.h.b16 %v334
    %v2229 = vunpack.c.l.b16 %v335
    %v2230 = vunpack.c.h.b16 %v335
    %v2231 = vunpack.c.l.b16 %v336
    %v2232 = vunpack.c.h.b16 %v336
    %v2233 = vunpack.c.l.b16 %v337
    %v2234 = vunpack.c.h.b16 %v337
    %v2235 = vunpack.c.l.b16 %v338
    %v2236 = vunpack.c.h.b16 %v338
    %v2237 = vunpack.c.l.b16 %v339
    %v2238 = vunpack.c.h.b16 %v339
    %v2239 = vunpack.c.l.b16 %v340
    %v2240 = vunpack.c.h.b16 %v340
    %v2241 = vunpack.c.l.b16 %v341
    %v2242 = vunpack.c.h.b16 %v341
    %v2243 = vunpack.c.l.b16 %v342
    %v2244 = vunpack.c.h.b16 %v342
    %v2245 = vunpack.c.l.b16 %v343
    %v2246 = vunpack.c.h.b16 %v343
    %v2247 = vunpack.c.l.b16 %v344
    %v2248 = vunpack.c.h.b16 %v344
    %v2249 = vunpack.c.l.b16 %v345
    %v2250 = vunpack.c.h.b16 %v345
    %v2251 = vunpack.c.l.b16 %v346
    %v2252 = vunpack.c.h.b16 %v346
    %v2253 = vunpack.c.l.b16 %v347
    %v2254 = vunpack.c.h.b16 %v347
    %v2255 = vunpack.c.l.b16 %v348
    %v2256 = vunpack.c.h.b16 %v348
    %v2257 = vunpack.c.l.b16 %v349
    %v2258 = vunpack.c.h.b16 %v349
    %v2259 = vunpack.c.l.b16 %v350
    %v2260 = vunpack.c.h.b16 %v350
    %v2261 = vunpack.c.l.b16 %v351
    %v2262 = vunpack.c.h.b16 %v351
    %v2263 = vunpack.c.l.b16 %v352
    %v2264 = vunpack.c.h.b16 %v352
    %v2265 = vunpack.c.l.b16 %v353
    %v2266 = vunpack.c.h.b16 %v353
    %v2267 = vunpack.c.l.b16 %v354
    %v2268 = vunpack.c.h.b16 %v354
    %v2269 = vunpack.c.l.b16 %v355
    %v2270 = vunpack.c.h.b16 %v355
    %v2271 = vunpack.c.l.b16 %v356
    %v2272 = vunpack.c.h.b16 %v356
    %v2273 = vunpack.c.l.b16 %v357
    %v2274 = vunpack.c.h.b16 %v357
    %v2275 = vunpack.c.l.b16 %v358
    %v2276 = vunpack.c.h.b16 %v358
    %v2277 = vunpack.c.l.b16 %v359
    %v2278 = vunpack.c.h.b16 %v359
    %v2279 = vunpack.c.l.b16 %v360
    %v2280 = vunpack.c.h.b16 %v360
    %v2281 = vunpack.c.l.b16 %v361
    %v2282 = vunpack.c.h.b16 %v361
    %v2283 = vunpack.c.l.b16 %v362
    %v2284 = vunpack.c.h.b16 %v362
    %v2285 = vunpack.c.l.b16 %v363
    %v2286 = vunpack.c.h.b16 %v363
    %v2287 = vunpack.c.l.b16 %v364
    %v2288 = vunpack.c.h.b16 %v364
    %v2289 = vunpack.c.l.b16 %v365
    %v2290 = vunpack.c.h.b16 %v365
    %v2291 = vunpack.c.l.b16 %v366
    %v2292 = vunpack.c.h.b16 %v366
    %v2293 = vunpack.c.l.b16 %v367
    %v2294 = vunpack.c.h.b16 %v367
    %v2295 = vunpack.c.l.b16 %v368
    %v2296 = vunpack.c.h.b16 %v368
    %v2297 = vunpack.c.l.b16 %v369
    %v2298 = vunpack.c.h.b16 %v369
    %v2299 = vunpack.c.l.b16 %v370
    %v2300 = vunpack.c.h.b16 %v370
    %v2301 = vpack.c.b16 %v2175, %v2173
    %v2302 = vpack.c.b16 %v2176, %v2174
    %v2303 = vpack.c.b16 %v2179, %v2177
    %v2304 = vpack.c.b16 %v2180, %v2178
    %v2305 = vpack.c.b16 %v2183, %v2181
    %v2306 = vpack.c.b16 %v2184, %v2182
    %v2307 = vpack.c.b16 %v2187, %v2185
    %v2308 = vpack.c.b16 %v2188, %v2186
    %v2309 = vpack.c.b16 %v2191, %v2189
    %v2310 = vpack.c.b16 %v2192, %v2190
    %v2311 = vpack.c.b16 %v2195, %v2193
    %v2312 = vpack.c.b16 %v2196, %v2194
    %v2313 = vpack.c.b16 %v2199, %v2197
    %v2314 = vpack.c.b16 %v2200, %v2198
    %v2315 = vpack.c.b16 %v2203, %v2201
    %v2316 = vpack.c.b16 %v2204, %v2202
    %v2317 = vpack.c.b16 %v2207, %v2205
    %v2318 = vpack.c.b16 %v2208, %v2206
    %v2319 = vpack.c.b16 %v2211, %v2209
    %v2320 = vpack.c.b16 %v2212, %v2210
    %v2321 = vpack.c.b16 %v2215, %v2213
    %v2322 = vpack.c.b16 %v2216, %v2214
    %v2323 = vpack.c.b16 %v2219, %v2217
    %v2324 = vpack.c.b16 %v2220, %v2218
    %v2325 = vpack.c.b16 %v2223, %v2221
    %v2326 = vpack.c.b16 %v2224, %v2222
    %v2327 = vpack.c.b16 %v2227, %v2225
    %v2328 = vpack.c.b16 %v2228, %v2226
    %v2329 = vpack.c.b16 %v2231, %v2229
    %v2330 = vpack.c.b16 %v2232, %v2230
    %v2331 = vpack.c.b16 %v2235, %v2233
    %v2332 = vpack.c.b16 %v2236, %v2234
    %v2333 = vpack.c.b16 %v2239, %v2237
    %v2334 = vpack.c.b16 %v2240, %v2238
    %v2335 = vpack.c.b16 %v2243, %v2241
    %v2336 = vpack.c.b16 %v2244, %v2242
    %v2337 = vpack.c.b16 %v2247, %v2245
    %v2338 = vpack.c.b16 %v2248, %v2246
    %v2339 = vpack.c.b16 %v2251, %v2249
    %v2340 = vpack.c.b16 %v2252, %v2250
    %v2341 = vpack.c.b16 %v2255, %v2253
    %v2342 = vpack.c.b16 %v2256, %v2254
    %v2343 = vpack.c.b16 %v2259, %v2257
    %v2344 = vpack.c.b16 %v2260, %v2258
    %v2345 = vpack.c.b16 %v2263, %v2261
    %v2346 = vpack.c.b16 %v2264, %v2262
    %v2347 = vpack.c.b16 %v2267, %v2265
    %v2348 = vpack.c.b16 %v2268, %v2266
    %v2349 = vpack.c.b16 %v2271, %v2269
    %v2350 = vpack.c.b16 %v2272, %v2270
    %v2351 = vpack.c.b16 %v2275, %v2273
    %v2352 = vpack.c.b16 %v2276, %v2274
    %v2353 = vpack.c.b16 %v2279, %v2277
    %v2354 = vpack.c.b16 %v2280, %v2278
    %v2355 = vpack.c.b16 %v2283, %v2281
    %v2356 = vpack.c.b16 %v2284, %v2282
    %v2357 = vpack.c.b16 %v2287, %v2285
    %v2358 = vpack.c.b16 %v2288, %v2286
    %v2359 = vpack.c.b16 %v2291, %v2289
    %v2360 = vpack.c.b16 %v2292, %v2290
    %v2361 = vpack.c.b16 %v2295, %v2293
    %v2362 = vpack.c.b16 %v2296, %v2294
    %v2363 = vpack.c.b16 %v2299, %v2297
    %v2364 = vpack.c.b16 %v2300, %v2298
    %2429 = vmatpush.bf16.msra.mxu0 %v2315
    %2430 = vmatpush.bf16.msra.mxu0 %v2313
    %2431 = vmatpush.bf16.msra.mxu0 %v2311
    %2432 = vmatpush.bf16.msra.mxu0 %v2309
    %2433 = vmatpush.bf16.msra.mxu0 %v2307
    %2434 = vmatpush.bf16.msra.mxu0 %v2305
    %2435 = vmatpush.bf16.msra.mxu0 %v2303
    %2436 = vmatpush.bf16.msra.mxu0 %v2301
    %2437 = vmatmul.bf16.gmra.mxu0 %v2100
    %v2438 = vpop.f32.mrf.mxu0
    %v2439 = vadd.f32 %v2105, %v2438
    %v2440 = vpop.f32.mrf.mxu0
    %2441 = vdwg.mxu0
    %2442 = vmatpush.bf16.msra.mxu0 %v2331
    %2443 = vmatpush.bf16.msra.mxu0 %v2329
    %2444 = vmatpush.bf16.msra.mxu0 %v2327
    %2445 = vmatpush.bf16.msra.mxu0 %v2325
    %2446 = vmatpush.bf16.msra.mxu0 %v2323
    %2447 = vmatpush.bf16.msra.mxu0 %v2321
    %2448 = vmatpush.bf16.msra.mxu0 %v2319
    %2449 = vmatpush.bf16.msra.mxu0 %v2317
    %2450 = vmatmul.bf16.gmra.mxu0 %v2101
    %v2451 = vpop.f32.mrf.mxu0
    %v2452 = vadd.f32 %v2439, %v2451
    %v2453 = vpop.f32.mrf.mxu0
    %2454 = vdwg.mxu0
    %2455 = vmatpush.bf16.msra.mxu0 %v2347
    %2456 = vmatpush.bf16.msra.mxu0 %v2345
    %2457 = vmatpush.bf16.msra.mxu0 %v2343
    %2458 = vmatpush.bf16.msra.mxu0 %v2341
    %2459 = vmatpush.bf16.msra.mxu0 %v2339
    %2460 = vmatpush.bf16.msra.mxu0 %v2337
    %2461 = vmatpush.bf16.msra.mxu0 %v2335
    %2462 = vmatpush.bf16.msra.mxu0 %v2333
    %2463 = vmatmul.bf16.gmra.mxu0 %v2102
    %v2464 = vpop.f32.mrf.mxu0
    %v2465 = vadd.f32 %v2452, %v2464
    %v2466 = vpop.f32.mrf.mxu0
    %2467 = vdwg.mxu0
    %2468 = vmatpush.bf16.msra.mxu0 %v2363
    %2469 = vmatpush.bf16.msra.mxu0 %v2361
    %2470 = vmatpush.bf16.msra.mxu0 %v2359
    %2471 = vmatpush.bf16.msra.mxu0 %v2357
    %2472 = vmatpush.bf16.msra.mxu0 %v2355
    %2473 = vmatpush.bf16.msra.mxu0 %v2353
    %2474 = vmatpush.bf16.msra.mxu0 %v2351
    %2475 = vmatpush.bf16.msra.mxu0 %v2349
    %2476 = vmatmul.bf16.gmra.mxu0 %v2103
    %v2477 = vpop.f32.mrf.mxu0
    %v2478 = vadd.f32 %v2465, %v2477
    %v2479 = vpop.f32.mrf.mxu0
    %2480 = vdwg.mxu0
    %2481 = vmatpush.bf16.msra.mxu0 %v2316
    %2482 = vmatpush.bf16.msra.mxu0 %v2314
    %2483 = vmatpush.bf16.msra.mxu0 %v2312
    %2484 = vmatpush.bf16.msra.mxu0 %v2310
    %2485 = vmatpush.bf16.msra.mxu0 %v2308
    %2486 = vmatpush.bf16.msra.mxu0 %v2306
    %2487 = vmatpush.bf16.msra.mxu0 %v2304
    %2488 = vmatpush.bf16.msra.mxu0 %v2302
    %2489 = vmatmul.bf16.gmra.mxu0 %v2100
    %v2490 = vpop.f32.mrf.mxu0
    %v2491 = vadd.f32 %v2106, %v2490
    %v2492 = vpop.f32.mrf.mxu0
    %2493 = vdwg.mxu0
    %2494 = vmatpush.bf16.msra.mxu0 %v2332
    %2495 = vmatpush.bf16.msra.mxu0 %v2330
    %2496 = vmatpush.bf16.msra.mxu0 %v2328
    %2497 = vmatpush.bf16.msra.mxu0 %v2326
    %2498 = vmatpush.bf16.msra.mxu0 %v2324
    %2499 = vmatpush.bf16.msra.mxu0 %v2322
    %2500 = vmatpush.bf16.msra.mxu0 %v2320
    %2501 = vmatpush.bf16.msra.mxu0 %v2318
    %2502 = vmatmul.bf16.gmra.mxu0 %v2101
    %v2503 = vpop.f32.mrf.mxu0
    %v2504 = vadd.f32 %v2491, %v2503
    %v2505 = vpop.f32.mrf.mxu0
    %2506 = vdwg.mxu0
    %2507 = vmatpush.bf16.msra.mxu0 %v2348
    %2508 = vmatpush.bf16.msra.mxu0 %v2346
    %2509 = vmatpush.bf16.msra.mxu0 %v2344
    %2510 = vmatpush.bf16.msra.mxu0 %v2342
    %2511 = vmatpush.bf16.msra.mxu0 %v2340
    %2512 = vmatpush.bf16.msra.mxu0 %v2338
    %2513 = vmatpush.bf16.msra.mxu0 %v2336
    %2514 = vmatpush.bf16.msra.mxu0 %v2334
    %2515 = vmatmul.bf16.gmra.mxu0 %v2102
    %v2516 = vpop.f32.mrf.mxu0
    %v2517 = vadd.f32 %v2504, %v2516
    %v2518 = vpop.f32.mrf.mxu0
    %2519 = vdwg.mxu0
    %2520 = vmatpush.bf16.msra.mxu0 %v2364
    %2521 = vmatpush.bf16.msra.mxu0 %v2362
    %2522 = vmatpush.bf16.msra.mxu0 %v2360
    %2523 = vmatpush.bf16.msra.mxu0 %v2358
    %2524 = vmatpush.bf16.msra.mxu0 %v2356
    %2525 = vmatpush.bf16.msra.mxu0 %v2354
    %2526 = vmatpush.bf16.msra.mxu0 %v2352
    %2527 = vmatpush.bf16.msra.mxu0 %v2350
    %2528 = vmatmul.bf16.gmra.mxu0 %v2103
    %v2529 = vpop.f32.mrf.mxu0
    %v2530 = vadd.f32 %v2517, %v2529
    %v2531 = vpop.f32.mrf.mxu0
    %2532 = vdwg.mxu0
    %v2533 = vtanh.pop %v2478
    %v2534 = vtanh.pop %v2530
    %v2535 = vpack.c.bf16 %v2533, %v2533
    %v2536 = vpack.c.bf16 %v2534, %v2534
    %v2538 = vperm.slane %v404, 0
    %v2572 = vunpack.c.l.b16 %v372
    %v2573 = vunpack.c.l.b16 %v373
    %v2574 = vunpack.c.l.b16 %v374
    %v2575 = vunpack.c.l.b16 %v375
    %v2576 = vunpack.c.l.b16 %v376
    %v2577 = vunpack.c.l.b16 %v377
    %v2578 = vunpack.c.l.b16 %v378
    %v2579 = vunpack.c.l.b16 %v379
    %v2580 = vunpack.c.l.b16 %v380
    %v2581 = vunpack.c.l.b16 %v381
    %v2582 = vunpack.c.l.b16 %v382
    %v2583 = vunpack.c.l.b16 %v383
    %v2584 = vunpack.c.l.b16 %v384
    %v2585 = vunpack.c.l.b16 %v385
    %v2586 = vunpack.c.l.b16 %v386
    %v2587 = vunpack.c.l.b16 %v387
    %v2588 = vunpack.c.l.b16 %v388
    %v2589 = vunpack.c.l.b16 %v389
    %v2590 = vunpack.c.l.b16 %v390
    %v2591 = vunpack.c.l.b16 %v391
    %v2592 = vunpack.c.l.b16 %v392
    %v2593 = vunpack.c.l.b16 %v393
    %v2594 = vunpack.c.l.b16 %v394
    %v2595 = vunpack.c.l.b16 %v395
    %v2596 = vunpack.c.l.b16 %v396
    %v2597 = vunpack.c.l.b16 %v397
    %v2598 = vunpack.c.l.b16 %v398
    %v2599 = vunpack.c.l.b16 %v399
    %v2600 = vunpack.c.l.b16 %v400
    %v2601 = vunpack.c.l.b16 %v401
    %v2602 = vunpack.c.l.b16 %v402
    %v2603 = vunpack.c.l.b16 %v403
    %v2604 = vpack.c.b16 %v2573, %v2572
    %v2605 = vpack.c.b16 %v2575, %v2574
    %v2606 = vpack.c.b16 %v2577, %v2576
    %v2607 = vpack.c.b16 %v2579, %v2578
    %v2608 = vpack.c.b16 %v2581, %v2580
    %v2609 = vpack.c.b16 %v2583, %v2582
    %v2610 = vpack.c.b16 %v2585, %v2584
    %v2611 = vpack.c.b16 %v2587, %v2586
    %v2612 = vpack.c.b16 %v2589, %v2588
    %v2613 = vpack.c.b16 %v2591, %v2590
    %v2614 = vpack.c.b16 %v2593, %v2592
    %v2615 = vpack.c.b16 %v2595, %v2594
    %v2616 = vpack.c.b16 %v2597, %v2596
    %v2617 = vpack.c.b16 %v2599, %v2598
    %v2618 = vpack.c.b16 %v2601, %v2600
    %v2619 = vpack.c.b16 %v2603, %v2602
    %2636 = vmatpush.bf16.msra.mxu0 %v2611
    %2637 = vmatpush.bf16.msra.mxu0 %v2610
    %2638 = vmatpush.bf16.msra.mxu0 %v2609
    %2639 = vmatpush.bf16.msra.mxu0 %v2608
    %2640 = vmatpush.bf16.msra.mxu0 %v2607
    %2641 = vmatpush.bf16.msra.mxu0 %v2606
    %2642 = vmatpush.bf16.msra.mxu0 %v2605
    %2643 = vmatpush.bf16.msra.mxu0 %v2604
    %2644 = vmatmul.bf16.gmra.mxu0 %v2535
    %v2645 = vpop.f32.mrf.mxu0
    %v2646 = vadd.f32 %v2538, %v2645
    %v2647 = vpop.f32.mrf.mxu0
    %2648 = vdwg.mxu0
    %2649 = vmatpush.bf16.msra.mxu0 %v2619
    %2650 = vmatpush.bf16.msra.mxu0 %v2618
    %2651 = vmatpush.bf16.msra.mxu0 %v2617
    %2652 = vmatpush.bf16.msra.mxu0 %v2616
    %2653 = vmatpush.bf16.msra.mxu0 %v2615
    %2654 = vmatpush.bf16.msra.mxu0 %v2614
    %2655 = vmatpush.bf16.msra.mxu0 %v2613
    %2656 = vmatpush.bf16.msra.mxu0 %v2612
    %2657 = vmatmul.bf16.gmra.mxu0 %v2536
    %v2658 = vpop.f32.mrf.mxu0
    %v2659 = vadd.f32 %v2646, %v2658
    %v2660 = vpop.f32.mrf.mxu0
    %2661 = vdwg.mxu0
    %v2662 = vlaneseq
    %v2663 = vand.u32 %v2662, 127
    %vm2664 = vcmask 80896
    %v2665 = vsel %vm2664, %v2659, -inf
    %2666 = vmax.xlane.f32.xlu0 %v2665
    %v2667 = vpop.xlane.xlu0 %2666
    %vm2668 = vcmp.eq.f32.partialorder %v2659, %v2667
    %v2669 = vsel %vm2668, %v2663, 2147483647
    %v2670 = vsel %vm2664, %v2669, 2147483647
    %v2671 = vand.u32 %v2670, 65535
    %v2672 = vshra.s32 %v2670, 16
    %v2673 = vcvt.s32.f32 %v2671
    %v2674 = vcvt.s32.f32 %v2672
    %2675 = vmin.xlane.f32.xlu0 %v2674
    %v2676 = vpop.xlane.xlu0 %2675
    %vm2677 = vcmp.eq.f32.partialorder %v2674, %v2676
    %v2678 = vsel %vm2677, %v2673, inf
    %2679 = vmin.xlane.f32.xlu0 %v2678
    %v2680 = vpop.xlane.xlu0 %2679
    %v2681 = vcvt.f32.s32 %v2680
    %v2682 = vcvt.f32.s32 %v2676
    %v2683 = vshll.u32 %v2682, 16
    %v2684 = vadd.s32 %v2683, %v2681
    %vm2685 = vcmask 7168
    %2686 = vst.msk [vmem:[%s9] sm:$0xff] %vm2685, %v2684
    // Predicated region
    $region46: #{tpu_custom_call.1} parent=1 // pred_check
      _
    $region47: #{tpu_custom_call.1} parent=1 // pred_check_branch
      %2688 = sbr.rel (0) target = $region49
    $region48: #{tpu_custom_call.1} parent=1 // pred_region
      _
    $region49: #{tpu_custom_call.1} parent=1 // pred_fallthru
      _
    // Predicated region
    $region50: #{tpu_custom_call.1} parent=1 // pred_check
      _
    $region51: #{tpu_custom_call.1} parent=1 // pred_check_branch
      %2690 = sbr.rel (0) target = $region53
    $region52: #{tpu_custom_call.1} parent=1 // pred_region
      _
    $region53: #{tpu_custom_call.1} parent=1 // pred_fallthru
      _
    %2691 = vsyncpa [#allocation3], 1
    %2692 = vsyncpa [#allocation5], 1

</llo_original>
